<compile_context>
chip_gen: v5e
topology: v5e:2x2
jax: 0.10.0
libtpu: 0.0.40
codegen_flags: <defaults>
</compile_context>

<pallas_src>
import functools

import jax
import jax.numpy as jnp
from jax.experimental import pallas as pl
from jax.experimental.pallas import tpu as pltpu

# NEUTRAL_IDS / NONNEUTRAL_IDS are not defined in the source snippet; pick
# small deterministic vocabulary sizes consistent with the module structure.
N_NONNEUTRAL = 32   # len(NONNEUTRAL_IDS)
N_NEUTRAL = 16      # len(NEUTRAL_IDS)


def _embed_lookup(ids, tab_ref, n_vocab, n_chains=4):
    """F.embedding with embed_size=1 over a small static vocab.

    Implemented as select chains: the vocab is split into `n_chains`
    independent partial chains (breaks the serial data dependence so the VLIW
    packer can fill all 4 VALU slots), each starting from zeros, combined with
    a small addition tree (exactly one id matches, all other partials are 0,
    so the sum is exact regardless of the sign of the table values).
    Out-of-range ids produce 0.0.
    """
    n_chains = max(1, min(n_chains, n_vocab))
    per = -(-n_vocab // n_chains)          # ceil
    partials = []
    for c in range(n_chains):
        lo = c * per
        hi = min(n_vocab, lo + per)
        if lo >= hi:
            break
        acc = jnp.zeros(ids.shape, jnp.float32)
        for k in range(lo, hi):
            acc = jnp.where(ids == k, tab_ref[k], acc)
        partials.append(acc)
    # tree-combine the partial chains (keeps ILP in the combine too)
    while len(partials) > 1:
        nxt = []
        for i in range(0, len(partials), 2):
            if i + 1 < len(partials):
                nxt.append(partials[i] + partials[i + 1])
            else:
                nxt.append(partials[i])
        partials = nxt
    return partials[0]


def _reducer_kernel(ptab_ref, ntab_ref, dw_ref, ids_ref, vals_ref, out_ref,
                    *, cp, n_player, n_neutral):
    """One batch tile per grid step.

    ptab_ref: SMEM (n_player,)  f32   player unit embedding table (embed_size=1)
    ntab_ref: SMEM (n_neutral,) f32   neutral unit embedding table
    dw_ref:   SMEM (2,)         f32   [player_dense_weight, neutral_dense_weight]
    ids_ref:  VMEM (B_TILE, 3*C', HW) int32   rows: [p_idx0 | p_idx1 | neutral]
    vals_ref: VMEM (B_TILE, 3*C', HW) f32
    out_ref:  VMEM (3, B_TILE, HW)    f32     channels: [player_2, neutral, player_1]
    """
    ids = ids_ref[...]      # (B_TILE, 3*C', HW)
    vals = vals_ref[...]

    # ---- player channels (p_idx 0 and 1): one lookup over a dense tile ----
    ids_p = ids[:, 0:2 * cp, :]                    # (B_TILE, 2*C', HW)
    vals_p = vals[:, 0:2 * cp, :]
    emb_p = _embed_lookup(ids_p, ptab_ref, n_player)
    prod_p = emb_p * vals_p
    red_p0 = jnp.max(prod_p[:, 0:cp, :], axis=1)        # p_idx 0 -> (B_TILE, HW)
    red_p1 = jnp.max(prod_p[:, cp:2 * cp, :], axis=1)   # p_idx 1 -> (B_TILE, HW)

    # ---- neutral channel (p_idx 2) ----
    ids_n = ids[:, 2 * cp:3 * cp, :]               # (B_TILE, C', HW)
    vals_n = vals[:, 2 * cp:3 * cp, :]
    emb_n = _embed_lookup(ids_n, ntab_ref, n_neutral)
    red_n = jnp.max(emb_n * vals_n, axis=1)              # (B_TILE, HW)

    dwp = dw_ref[0]
    dwn = dw_ref[1]
    # Output channel order from forward(): [player_2 (p_idx 1), neutral, player_1 (p_idx 0)]
    # Three dense (B_TILE, HW) slab stores (unmasked: B_TILE % 8 == 0, HW lane-dense).
    out_ref[0] = red_p1 * dwp
    out_ref[1] = red_n * dwn
    out_ref[2] = red_p0 * dwp


def starcraft_to_image_reduce(bag_of_units_ids, bag_of_units_values,
                              player_table, neutral_table, dense_weights,
                              *, b_tile=None):
    """bag_of_units_ids/values: (B, 3, C', H, W); tables: (N,); dense_weights: (2,)."""
    B, P, Cp, H, W = bag_of_units_ids.shape
    assert P == 3, "expects exactly 3 player channels (player_1, player_2, neutral)"
    HW = H * W

    # Batch tile: big enough to amortize per-step overhead, small enough to
    # keep >= 2 grid steps for realistic B (v7x megacore sharding).
    if b_tile is None:
        b_tile = min(32, max(8, 8 * ((B + 15) // 16)))
    assert b_tile % 8 == 0
    n_steps = -(-B // b_tile)
    b_pad = n_steps * b_tile

    # Free, contiguous reshape: rows [0:C')=p_idx0, [C':2C')=p_idx1, [2C':3C')=neutral.
    ids = bag_of_units_ids.astype(jnp.int32).reshape(B, P * Cp, HW)
    vals = bag_of_units_values.astype(jnp.float32).reshape(B, P * Cp, HW)
    if b_pad != B:
        pad = ((0, b_pad - B), (0, 0), (0, 0))
        ids = jnp.pad(ids, pad)    # id 0 is a valid row of both tables
        vals = jnp.pad(vals, pad)  # zero values -> padded rows are inert

    kernel = functools.partial(
        _reducer_kernel,
        cp=int(Cp),
        n_player=int(player_table.shape[0]),
        n_neutral=int(neutral_table.shape[0]),
    )

    out = pl.pallas_call(
        kernel,
        grid=(n_steps,),
        in_specs=[
            pl.BlockSpec(memory_space=pltpu.MemorySpace.SMEM),   # player embed table
            pl.BlockSpec(memory_space=pltpu.MemorySpace.SMEM),   # neutral embed table
            pl.BlockSpec(memory_space=pltpu.MemorySpace.SMEM),   # dense weights
            pl.BlockSpec((b_tile, P * Cp, HW), lambda t: (t, 0, 0)),  # ids
            pl.BlockSpec((b_tile, P * Cp, HW), lambda t: (t, 0, 0)),  # values
        ],
        out_specs=pl.BlockSpec((P, b_tile, HW), lambda t: (0, t, 0)),
        out_shape=jax.ShapeDtypeStruct((P, b_pad, HW), jnp.float32),
        compiler_params=pltpu.CompilerParams(dimension_semantics=("parallel",)),
    )(player_table.astype(jnp.float32),
      neutral_table.astype(jnp.float32),
      dense_weights.astype(jnp.float32),
      ids, vals)

    out = out[:, :B, :]                            # drop batch padding
    return jnp.transpose(out, (1, 0, 2)).reshape(B, 3, H, W)


def _reference(ids, vals, player_table, neutral_table, dense_weights):
    """Pure-JAX reference of the PyTorch forward pass."""
    def chan(p_idx, tab):
        e = tab[ids[:, p_idx]]                 # F.embedding, embed_size=1
        prod = e * vals[:, p_idx]
        return prod.max(axis=1)                # amax over C'
    c_p2 = chan(1, player_table) * dense_weights[0]
    c_n = chan(2, neutral_table) * dense_weights[1]
    c_p1 = chan(0, player_table) * dense_weights[0]
    return jnp.stack([c_p2, c_n, c_p1], axis=1)   # cat along channel dim


if __name__ == "__main__":
    key = jax.random.PRNGKey(0)
    k_idp, k_idn, k_vals, k_ptab, k_ntab = jax.random.split(key, 5)

    B, Cp, H, W = 2, 4, 16, 16   # batch, max-overlap channels, spatial

    # unit-id bags: channels 0,1 index into the player table, channel 2 into
    # the neutral table (matches channel_setup indices used in forward()).
    ids_player = jax.random.randint(k_idp, (B, 2, Cp, H, W), 0, N_NONNEUTRAL)
    ids_neutral = jax.random.randint(k_idn, (B, 1, Cp, H, W), 0, N_NEUTRAL)
    bag_of_units_ids = jnp.concatenate([ids_player, ids_neutral], axis=1).astype(jnp.int32)
    bag_of_units_values = jax.random.uniform(k_vals, (B, 3, Cp, H, W), dtype=jnp.float32)

    # Parameters (shapes from __init__). __init__ uses all-ones embeddings;
    # we use deterministic non-trivial values so the embedding gather is
    # actually exercised. Dense weights use the __init__ defaults (1.0, 0.2).
    player_table = jax.random.uniform(k_ptab, (N_NONNEUTRAL,), jnp.float32, 0.5, 1.5)
    neutral_table = jax.random.uniform(k_ntab, (N_NEUTRAL,), jnp.float32, 0.5, 1.5)
    dense_weights = jnp.array([1.0, 0.2], dtype=jnp.float32)

    out = starcraft_to_image_reduce(bag_of_units_ids, bag_of_units_values,
                                    player_table, neutral_table, dense_weights)
    out = jax.block_until_ready(out)

    ref = _reference(bag_of_units_ids, bag_of_units_values,
                     player_table, neutral_table, dense_weights)
    ref = jax.block_until_ready(ref)

    assert out.shape == (B, 3, H, W), out.shape
    assert jnp.allclose(out, ref, atol=1e-5, rtol=1e-5), "mismatch vs reference"
    print("KERNEL_OK")
</pallas_src>

<mosaic_0001>
module attributes {stable_mosaic.version = 11 : i64} {
  func.func @_reducer_kernel(%arg0: i32, %arg1: memref<32xf32, #tpu.memory_space<smem>>, %arg2: memref<16xf32, #tpu.memory_space<smem>>, %arg3: memref<2xf32, #tpu.memory_space<smem>>, %arg4: memref<8x12x256xi32, #tpu.memory_space<vmem>>, %arg5: memref<8x12x256xf32, #tpu.memory_space<vmem>>, %arg6: memref<3x8x256xf32, #tpu.memory_space<vmem>>) attributes {dimension_semantics = [#tpu.dimension_semantics<parallel>], iteration_bounds = array<i64: 1>, scalar_prefetch = 0 : i64, scratch_operands = 0 : i64, tpu.core_type = #tpu.core_type<tc>, window_params = [{transform_indices = @transform_0, window_bounds = array<i64: 32>}, {transform_indices = @transform_1, window_bounds = array<i64: 16>}, {transform_indices = @transform_2, window_bounds = array<i64: 2>}, {transform_indices = @transform_3, window_bounds = array<i64: 8, 12, 256>}, {transform_indices = @transform_4, window_bounds = array<i64: 8, 12, 256>}, {transform_indices = @transform_5, window_bounds = array<i64: 3, 8, 256>}]} {
    %c0 = arith.constant 0 : index
    %c0_0 = arith.constant 0 : index
    %c0_1 = arith.constant 0 : index
    %0 = vector.load %arg4[%c0, %c0_0, %c0_1] : memref<8x12x256xi32, #tpu.memory_space<vmem>>, vector<8x12x256xi32>
    %c0_2 = arith.constant 0 : index
    %c0_3 = arith.constant 0 : index
    %c0_4 = arith.constant 0 : index
    %1 = vector.load %arg5[%c0_2, %c0_3, %c0_4] : memref<8x12x256xf32, #tpu.memory_space<vmem>>, vector<8x12x256xf32>
    %2 = vector.extract_strided_slice %0 {offsets = [0, 0, 0], sizes = [8, 8, 256], strides = [1, 1, 1]} : vector<8x12x256xi32> to vector<8x8x256xi32>
    %3 = vector.extract_strided_slice %1 {offsets = [0, 0, 0], sizes = [8, 8, 256], strides = [1, 1, 1]} : vector<8x12x256xf32> to vector<8x8x256xf32>
    %cst = arith.constant 0.000000e+00 : f32
    %4 = vector.broadcast %cst : f32 to vector<8x8x256xf32>
    %c0_i32 = arith.constant 0 : i32
    %5 = vector.broadcast %c0_i32 : i32 to vector<8x8x256xi32>
    %6 = arith.cmpi eq, %2, %5 : vector<8x8x256xi32>
    %c0_5 = arith.constant 0 : index
    %7 = memref.load %arg1[%c0_5] : memref<32xf32, #tpu.memory_space<smem>>
    %8 = vector.broadcast %7 : f32 to vector<8x8x256xf32>
    %9 = arith.select %6, %8, %4 : vector<8x8x256xi1>, vector<8x8x256xf32>
    %c1_i32 = arith.constant 1 : i32
    %10 = vector.broadcast %c1_i32 : i32 to vector<8x8x256xi32>
    %11 = arith.cmpi eq, %2, %10 : vector<8x8x256xi32>
    %c1 = arith.constant 1 : index
    %12 = memref.load %arg1[%c1] : memref<32xf32, #tpu.memory_space<smem>>
    %13 = vector.broadcast %12 : f32 to vector<8x8x256xf32>
    %14 = arith.select %11, %13, %9 : vector<8x8x256xi1>, vector<8x8x256xf32>
    %c2_i32 = arith.constant 2 : i32
    %15 = vector.broadcast %c2_i32 : i32 to vector<8x8x256xi32>
    %16 = arith.cmpi eq, %2, %15 : vector<8x8x256xi32>
    %c2 = arith.constant 2 : index
    %17 = memref.load %arg1[%c2] : memref<32xf32, #tpu.memory_space<smem>>
    %18 = vector.broadcast %17 : f32 to vector<8x8x256xf32>
    %19 = arith.select %16, %18, %14 : vector<8x8x256xi1>, vector<8x8x256xf32>
    %c3_i32 = arith.constant 3 : i32
    %20 = vector.broadcast %c3_i32 : i32 to vector<8x8x256xi32>
    %21 = arith.cmpi eq, %2, %20 : vector<8x8x256xi32>
    %c3 = arith.constant 3 : index
    %22 = memref.load %arg1[%c3] : memref<32xf32, #tpu.memory_space<smem>>
    %23 = vector.broadcast %22 : f32 to vector<8x8x256xf32>
    %24 = arith.select %21, %23, %19 : vector<8x8x256xi1>, vector<8x8x256xf32>
    %c4_i32 = arith.constant 4 : i32
    %25 = vector.broadcast %c4_i32 : i32 to vector<8x8x256xi32>
    %26 = arith.cmpi eq, %2, %25 : vector<8x8x256xi32>
    %c4 = arith.constant 4 : index
    %27 = memref.load %arg1[%c4] : memref<32xf32, #tpu.memory_space<smem>>
    %28 = vector.broadcast %27 : f32 to vector<8x8x256xf32>
    %29 = arith.select %26, %28, %24 : vector<8x8x256xi1>, vector<8x8x256xf32>
    %c5_i32 = arith.constant 5 : i32
    %30 = vector.broadcast %c5_i32 : i32 to vector<8x8x256xi32>
    %31 = arith.cmpi eq, %2, %30 : vector<8x8x256xi32>
    %c5 = arith.constant 5 : index
    %32 = memref.load %arg1[%c5] : memref<32xf32, #tpu.memory_space<smem>>
    %33 = vector.broadcast %32 : f32 to vector<8x8x256xf32>
    %34 = arith.select %31, %33, %29 : vector<8x8x256xi1>, vector<8x8x256xf32>
    %c6_i32 = arith.constant 6 : i32
    %35 = vector.broadcast %c6_i32 : i32 to vector<8x8x256xi32>
    %36 = arith.cmpi eq, %2, %35 : vector<8x8x256xi32>
    %c6 = arith.constant 6 : index
    %37 = memref.load %arg1[%c6] : memref<32xf32, #tpu.memory_space<smem>>
    %38 = vector.broadcast %37 : f32 to vector<8x8x256xf32>
    %39 = arith.select %36, %38, %34 : vector<8x8x256xi1>, vector<8x8x256xf32>
    %c7_i32 = arith.constant 7 : i32
    %40 = vector.broadcast %c7_i32 : i32 to vector<8x8x256xi32>
    %41 = arith.cmpi eq, %2, %40 : vector<8x8x256xi32>
    %c7 = arith.constant 7 : index
    %42 = memref.load %arg1[%c7] : memref<32xf32, #tpu.memory_space<smem>>
    %43 = vector.broadcast %42 : f32 to vector<8x8x256xf32>
    %44 = arith.select %41, %43, %39 : vector<8x8x256xi1>, vector<8x8x256xf32>
    %cst_6 = arith.constant 0.000000e+00 : f32
    %45 = vector.broadcast %cst_6 : f32 to vector<8x8x256xf32>
    %c8_i32 = arith.constant 8 : i32
    %46 = vector.broadcast %c8_i32 : i32 to vector<8x8x256xi32>
    %47 = arith.cmpi eq, %2, %46 : vector<8x8x256xi32>
    %c8 = arith.constant 8 : index
    %48 = memref.load %arg1[%c8] : memref<32xf32, #tpu.memory_space<smem>>
    %49 = vector.broadcast %48 : f32 to vector<8x8x256xf32>
    %50 = arith.select %47, %49, %45 : vector<8x8x256xi1>, vector<8x8x256xf32>
    %c9_i32 = arith.constant 9 : i32
    %51 = vector.broadcast %c9_i32 : i32 to vector<8x8x256xi32>
    %52 = arith.cmpi eq, %2, %51 : vector<8x8x256xi32>
    %c9 = arith.constant 9 : index
    %53 = memref.load %arg1[%c9] : memref<32xf32, #tpu.memory_space<smem>>
    %54 = vector.broadcast %53 : f32 to vector<8x8x256xf32>
    %55 = arith.select %52, %54, %50 : vector<8x8x256xi1>, vector<8x8x256xf32>
    %c10_i32 = arith.constant 10 : i32
    %56 = vector.broadcast %c10_i32 : i32 to vector<8x8x256xi32>
    %57 = arith.cmpi eq, %2, %56 : vector<8x8x256xi32>
    %c10 = arith.constant 10 : index
    %58 = memref.load %arg1[%c10] : memref<32xf32, #tpu.memory_space<smem>>
    %59 = vector.broadcast %58 : f32 to vector<8x8x256xf32>
    %60 = arith.select %57, %59, %55 : vector<8x8x256xi1>, vector<8x8x256xf32>
    %c11_i32 = arith.constant 11 : i32
    %61 = vector.broadcast %c11_i32 : i32 to vector<8x8x256xi32>
    %62 = arith.cmpi eq, %2, %61 : vector<8x8x256xi32>
    %c11 = arith.constant 11 : index
    %63 = memref.load %arg1[%c11] : memref<32xf32, #tpu.memory_space<smem>>
    %64 = vector.broadcast %63 : f32 to vector<8x8x256xf32>
    %65 = arith.select %62, %64, %60 : vector<8x8x256xi1>, vector<8x8x256xf32>
    %c12_i32 = arith.constant 12 : i32
    %66 = vector.broadcast %c12_i32 : i32 to vector<8x8x256xi32>
    %67 = arith.cmpi eq, %2, %66 : vector<8x8x256xi32>
    %c12 = arith.constant 12 : index
    %68 = memref.load %arg1[%c12] : memref<32xf32, #tpu.memory_space<smem>>
    %69 = vector.broadcast %68 : f32 to vector<8x8x256xf32>
    %70 = arith.select %67, %69, %65 : vector<8x8x256xi1>, vector<8x8x256xf32>
    %c13_i32 = arith.constant 13 : i32
    %71 = vector.broadcast %c13_i32 : i32 to vector<8x8x256xi32>
    %72 = arith.cmpi eq, %2, %71 : vector<8x8x256xi32>
    %c13 = arith.constant 13 : index
    %73 = memref.load %arg1[%c13] : memref<32xf32, #tpu.memory_space<smem>>
    %74 = vector.broadcast %73 : f32 to vector<8x8x256xf32>
    %75 = arith.select %72, %74, %70 : vector<8x8x256xi1>, vector<8x8x256xf32>
    %c14_i32 = arith.constant 14 : i32
    %76 = vector.broadcast %c14_i32 : i32 to vector<8x8x256xi32>
    %77 = arith.cmpi eq, %2, %76 : vector<8x8x256xi32>
    %c14 = arith.constant 14 : index
    %78 = memref.load %arg1[%c14] : memref<32xf32, #tpu.memory_space<smem>>
    %79 = vector.broadcast %78 : f32 to vector<8x8x256xf32>
    %80 = arith.select %77, %79, %75 : vector<8x8x256xi1>, vector<8x8x256xf32>
    %c15_i32 = arith.constant 15 : i32
    %81 = vector.broadcast %c15_i32 : i32 to vector<8x8x256xi32>
    %82 = arith.cmpi eq, %2, %81 : vector<8x8x256xi32>
    %c15 = arith.constant 15 : index
    %83 = memref.load %arg1[%c15] : memref<32xf32, #tpu.memory_space<smem>>
    %84 = vector.broadcast %83 : f32 to vector<8x8x256xf32>
    %85 = arith.select %82, %84, %80 : vector<8x8x256xi1>, vector<8x8x256xf32>
    %cst_7 = arith.constant 0.000000e+00 : f32
    %86 = vector.broadcast %cst_7 : f32 to vector<8x8x256xf32>
    %c16_i32 = arith.constant 16 : i32
    %87 = vector.broadcast %c16_i32 : i32 to vector<8x8x256xi32>
    %88 = arith.cmpi eq, %2, %87 : vector<8x8x256xi32>
    %c16 = arith.constant 16 : index
    %89 = memref.load %arg1[%c16] : memref<32xf32, #tpu.memory_space<smem>>
    %90 = vector.broadcast %89 : f32 to vector<8x8x256xf32>
    %91 = arith.select %88, %90, %86 : vector<8x8x256xi1>, vector<8x8x256xf32>
    %c17_i32 = arith.constant 17 : i32
    %92 = vector.broadcast %c17_i32 : i32 to vector<8x8x256xi32>
    %93 = arith.cmpi eq, %2, %92 : vector<8x8x256xi32>
    %c17 = arith.constant 17 : index
    %94 = memref.load %arg1[%c17] : memref<32xf32, #tpu.memory_space<smem>>
    %95 = vector.broadcast %94 : f32 to vector<8x8x256xf32>
    %96 = arith.select %93, %95, %91 : vector<8x8x256xi1>, vector<8x8x256xf32>
    %c18_i32 = arith.constant 18 : i32
    %97 = vector.broadcast %c18_i32 : i32 to vector<8x8x256xi32>
    %98 = arith.cmpi eq, %2, %97 : vector<8x8x256xi32>
    %c18 = arith.constant 18 : index
    %99 = memref.load %arg1[%c18] : memref<32xf32, #tpu.memory_space<smem>>
    %100 = vector.broadcast %99 : f32 to vector<8x8x256xf32>
    %101 = arith.select %98, %100, %96 : vector<8x8x256xi1>, vector<8x8x256xf32>
    %c19_i32 = arith.constant 19 : i32
    %102 = vector.broadcast %c19_i32 : i32 to vector<8x8x256xi32>
    %103 = arith.cmpi eq, %2, %102 : vector<8x8x256xi32>
    %c19 = arith.constant 19 : index
    %104 = memref.load %arg1[%c19] : memref<32xf32, #tpu.memory_space<smem>>
    %105 = vector.broadcast %104 : f32 to vector<8x8x256xf32>
    %106 = arith.select %103, %105, %101 : vector<8x8x256xi1>, vector<8x8x256xf32>
    %c20_i32 = arith.constant 20 : i32
    %107 = vector.broadcast %c20_i32 : i32 to vector<8x8x256xi32>
    %108 = arith.cmpi eq, %2, %107 : vector<8x8x256xi32>
    %c20 = arith.constant 20 : index
    %109 = memref.load %arg1[%c20] : memref<32xf32, #tpu.memory_space<smem>>
    %110 = vector.broadcast %109 : f32 to vector<8x8x256xf32>
    %111 = arith.select %108, %110, %106 : vector<8x8x256xi1>, vector<8x8x256xf32>
    %c21_i32 = arith.constant 21 : i32
    %112 = vector.broadcast %c21_i32 : i32 to vector<8x8x256xi32>
    %113 = arith.cmpi eq, %2, %112 : vector<8x8x256xi32>
    %c21 = arith.constant 21 : index
    %114 = memref.load %arg1[%c21] : memref<32xf32, #tpu.memory_space<smem>>
    %115 = vector.broadcast %114 : f32 to vector<8x8x256xf32>
    %116 = arith.select %113, %115, %111 : vector<8x8x256xi1>, vector<8x8x256xf32>
    %c22_i32 = arith.constant 22 : i32
    %117 = vector.broadcast %c22_i32 : i32 to vector<8x8x256xi32>
    %118 = arith.cmpi eq, %2, %117 : vector<8x8x256xi32>
    %c22 = arith.constant 22 : index
    %119 = memref.load %arg1[%c22] : memref<32xf32, #tpu.memory_space<smem>>
    %120 = vector.broadcast %119 : f32 to vector<8x8x256xf32>
    %121 = arith.select %118, %120, %116 : vector<8x8x256xi1>, vector<8x8x256xf32>
    %c23_i32 = arith.constant 23 : i32
    %122 = vector.broadcast %c23_i32 : i32 to vector<8x8x256xi32>
    %123 = arith.cmpi eq, %2, %122 : vector<8x8x256xi32>
    %c23 = arith.constant 23 : index
    %124 = memref.load %arg1[%c23] : memref<32xf32, #tpu.memory_space<smem>>
    %125 = vector.broadcast %124 : f32 to vector<8x8x256xf32>
    %126 = arith.select %123, %125, %121 : vector<8x8x256xi1>, vector<8x8x256xf32>
    %cst_8 = arith.constant 0.000000e+00 : f32
    %127 = vector.broadcast %cst_8 : f32 to vector<8x8x256xf32>
    %c24_i32 = arith.constant 24 : i32
    %128 = vector.broadcast %c24_i32 : i32 to vector<8x8x256xi32>
    %129 = arith.cmpi eq, %2, %128 : vector<8x8x256xi32>
    %c24 = arith.constant 24 : index
    %130 = memref.load %arg1[%c24] : memref<32xf32, #tpu.memory_space<smem>>
    %131 = vector.broadcast %130 : f32 to vector<8x8x256xf32>
    %132 = arith.select %129, %131, %127 : vector<8x8x256xi1>, vector<8x8x256xf32>
    %c25_i32 = arith.constant 25 : i32
    %133 = vector.broadcast %c25_i32 : i32 to vector<8x8x256xi32>
    %134 = arith.cmpi eq, %2, %133 : vector<8x8x256xi32>
    %c25 = arith.constant 25 : index
    %135 = memref.load %arg1[%c25] : memref<32xf32, #tpu.memory_space<smem>>
    %136 = vector.broadcast %135 : f32 to vector<8x8x256xf32>
    %137 = arith.select %134, %136, %132 : vector<8x8x256xi1>, vector<8x8x256xf32>
    %c26_i32 = arith.constant 26 : i32
    %138 = vector.broadcast %c26_i32 : i32 to vector<8x8x256xi32>
    %139 = arith.cmpi eq, %2, %138 : vector<8x8x256xi32>
    %c26 = arith.constant 26 : index
    %140 = memref.load %arg1[%c26] : memref<32xf32, #tpu.memory_space<smem>>
    %141 = vector.broadcast %140 : f32 to vector<8x8x256xf32>
    %142 = arith.select %139, %141, %137 : vector<8x8x256xi1>, vector<8x8x256xf32>
    %c27_i32 = arith.constant 27 : i32
    %143 = vector.broadcast %c27_i32 : i32 to vector<8x8x256xi32>
    %144 = arith.cmpi eq, %2, %143 : vector<8x8x256xi32>
    %c27 = arith.constant 27 : index
    %145 = memref.load %arg1[%c27] : memref<32xf32, #tpu.memory_space<smem>>
    %146 = vector.broadcast %145 : f32 to vector<8x8x256xf32>
    %147 = arith.select %144, %146, %142 : vector<8x8x256xi1>, vector<8x8x256xf32>
    %c28_i32 = arith.constant 28 : i32
    %148 = vector.broadcast %c28_i32 : i32 to vector<8x8x256xi32>
    %149 = arith.cmpi eq, %2, %148 : vector<8x8x256xi32>
    %c28 = arith.constant 28 : index
    %150 = memref.load %arg1[%c28] : memref<32xf32, #tpu.memory_space<smem>>
    %151 = vector.broadcast %150 : f32 to vector<8x8x256xf32>
    %152 = arith.select %149, %151, %147 : vector<8x8x256xi1>, vector<8x8x256xf32>
    %c29_i32 = arith.constant 29 : i32
    %153 = vector.broadcast %c29_i32 : i32 to vector<8x8x256xi32>
    %154 = arith.cmpi eq, %2, %153 : vector<8x8x256xi32>
    %c29 = arith.constant 29 : index
    %155 = memref.load %arg1[%c29] : memref<32xf32, #tpu.memory_space<smem>>
    %156 = vector.broadcast %155 : f32 to vector<8x8x256xf32>
    %157 = arith.select %154, %156, %152 : vector<8x8x256xi1>, vector<8x8x256xf32>
    %c30_i32 = arith.constant 30 : i32
    %158 = vector.broadcast %c30_i32 : i32 to vector<8x8x256xi32>
    %159 = arith.cmpi eq, %2, %158 : vector<8x8x256xi32>
    %c30 = arith.constant 30 : index
    %160 = memref.load %arg1[%c30] : memref<32xf32, #tpu.memory_space<smem>>
    %161 = vector.broadcast %160 : f32 to vector<8x8x256xf32>
    %162 = arith.select %159, %161, %157 : vector<8x8x256xi1>, vector<8x8x256xf32>
    %c31_i32 = arith.constant 31 : i32
    %163 = vector.broadcast %c31_i32 : i32 to vector<8x8x256xi32>
    %164 = arith.cmpi eq, %2, %163 : vector<8x8x256xi32>
    %c31 = arith.constant 31 : index
    %165 = memref.load %arg1[%c31] : memref<32xf32, #tpu.memory_space<smem>>
    %166 = vector.broadcast %165 : f32 to vector<8x8x256xf32>
    %167 = arith.select %164, %166, %162 : vector<8x8x256xi1>, vector<8x8x256xf32>
    %168 = arith.addf %44, %85 : vector<8x8x256xf32>
    %169 = arith.addf %126, %167 : vector<8x8x256xf32>
    %170 = arith.addf %168, %169 : vector<8x8x256xf32>
    %171 = arith.mulf %170, %3 : vector<8x8x256xf32>
    %172 = vector.extract_strided_slice %171 {offsets = [0, 0, 0], sizes = [8, 4, 256], strides = [1, 1, 1]} : vector<8x8x256xf32> to vector<8x4x256xf32>
    %cst_9 = arith.constant dense<0xFF800000> : vector<8x256xf32>
    %173 = vector.multi_reduction <maximumf>, %172, %cst_9 [1] : vector<8x4x256xf32> to vector<8x256xf32>
    %174 = vector.extract_strided_slice %171 {offsets = [0, 4, 0], sizes = [8, 4, 256], strides = [1, 1, 1]} : vector<8x8x256xf32> to vector<8x4x256xf32>
    %cst_10 = arith.constant dense<0xFF800000> : vector<8x256xf32>
    %175 = vector.multi_reduction <maximumf>, %174, %cst_10 [1] : vector<8x4x256xf32> to vector<8x256xf32>
    %176 = vector.extract_strided_slice %0 {offsets = [0, 8, 0], sizes = [8, 4, 256], strides = [1, 1, 1]} : vector<8x12x256xi32> to vector<8x4x256xi32>
    %177 = vector.extract_strided_slice %1 {offsets = [0, 8, 0], sizes = [8, 4, 256], strides = [1, 1, 1]} : vector<8x12x256xf32> to vector<8x4x256xf32>
    %cst_11 = arith.constant 0.000000e+00 : f32
    %178 = vector.broadcast %cst_11 : f32 to vector<8x4x256xf32>
    %c0_i32_12 = arith.constant 0 : i32
    %179 = vector.broadcast %c0_i32_12 : i32 to vector<8x4x256xi32>
    %180 = arith.cmpi eq, %176, %179 : vector<8x4x256xi32>
    %c0_13 = arith.constant 0 : index
    %181 = memref.load %arg2[%c0_13] : memref<16xf32, #tpu.memory_space<smem>>
    %182 = vector.broadcast %181 : f32 to vector<8x4x256xf32>
    %183 = arith.select %180, %182, %178 : vector<8x4x256xi1>, vector<8x4x256xf32>
    %c1_i32_14 = arith.constant 1 : i32
    %184 = vector.broadcast %c1_i32_14 : i32 to vector<8x4x256xi32>
    %185 = arith.cmpi eq, %176, %184 : vector<8x4x256xi32>
    %c1_15 = arith.constant 1 : index
    %186 = memref.load %arg2[%c1_15] : memref<16xf32, #tpu.memory_space<smem>>
    %187 = vector.broadcast %186 : f32 to vector<8x4x256xf32>
    %188 = arith.select %185, %187, %183 : vector<8x4x256xi1>, vector<8x4x256xf32>
    %c2_i32_16 = arith.constant 2 : i32
    %189 = vector.broadcast %c2_i32_16 : i32 to vector<8x4x256xi32>
    %190 = arith.cmpi eq, %176, %189 : vector<8x4x256xi32>
    %c2_17 = arith.constant 2 : index
    %191 = memref.load %arg2[%c2_17] : memref<16xf32, #tpu.memory_space<smem>>
    %192 = vector.broadcast %191 : f32 to vector<8x4x256xf32>
    %193 = arith.select %190, %192, %188 : vector<8x4x256xi1>, vector<8x4x256xf32>
    %c3_i32_18 = arith.constant 3 : i32
    %194 = vector.broadcast %c3_i32_18 : i32 to vector<8x4x256xi32>
    %195 = arith.cmpi eq, %176, %194 : vector<8x4x256xi32>
    %c3_19 = arith.constant 3 : index
    %196 = memref.load %arg2[%c3_19] : memref<16xf32, #tpu.memory_space<smem>>
    %197 = vector.broadcast %196 : f32 to vector<8x4x256xf32>
    %198 = arith.select %195, %197, %193 : vector<8x4x256xi1>, vector<8x4x256xf32>
    %cst_20 = arith.constant 0.000000e+00 : f32
    %199 = vector.broadcast %cst_20 : f32 to vector<8x4x256xf32>
    %c4_i32_21 = arith.constant 4 : i32
    %200 = vector.broadcast %c4_i32_21 : i32 to vector<8x4x256xi32>
    %201 = arith.cmpi eq, %176, %200 : vector<8x4x256xi32>
    %c4_22 = arith.constant 4 : index
    %202 = memref.load %arg2[%c4_22] : memref<16xf32, #tpu.memory_space<smem>>
    %203 = vector.broadcast %202 : f32 to vector<8x4x256xf32>
    %204 = arith.select %201, %203, %199 : vector<8x4x256xi1>, vector<8x4x256xf32>
    %c5_i32_23 = arith.constant 5 : i32
    %205 = vector.broadcast %c5_i32_23 : i32 to vector<8x4x256xi32>
    %206 = arith.cmpi eq, %176, %205 : vector<8x4x256xi32>
    %c5_24 = arith.constant 5 : index
    %207 = memref.load %arg2[%c5_24] : memref<16xf32, #tpu.memory_space<smem>>
    %208 = vector.broadcast %207 : f32 to vector<8x4x256xf32>
    %209 = arith.select %206, %208, %204 : vector<8x4x256xi1>, vector<8x4x256xf32>
    %c6_i32_25 = arith.constant 6 : i32
    %210 = vector.broadcast %c6_i32_25 : i32 to vector<8x4x256xi32>
    %211 = arith.cmpi eq, %176, %210 : vector<8x4x256xi32>
    %c6_26 = arith.constant 6 : index
    %212 = memref.load %arg2[%c6_26] : memref<16xf32, #tpu.memory_space<smem>>
    %213 = vector.broadcast %212 : f32 to vector<8x4x256xf32>
    %214 = arith.select %211, %213, %209 : vector<8x4x256xi1>, vector<8x4x256xf32>
    %c7_i32_27 = arith.constant 7 : i32
    %215 = vector.broadcast %c7_i32_27 : i32 to vector<8x4x256xi32>
    %216 = arith.cmpi eq, %176, %215 : vector<8x4x256xi32>
    %c7_28 = arith.constant 7 : index
    %217 = memref.load %arg2[%c7_28] : memref<16xf32, #tpu.memory_space<smem>>
    %218 = vector.broadcast %217 : f32 to vector<8x4x256xf32>
    %219 = arith.select %216, %218, %214 : vector<8x4x256xi1>, vector<8x4x256xf32>
    %cst_29 = arith.constant 0.000000e+00 : f32
    %220 = vector.broadcast %cst_29 : f32 to vector<8x4x256xf32>
    %c8_i32_30 = arith.constant 8 : i32
    %221 = vector.broadcast %c8_i32_30 : i32 to vector<8x4x256xi32>
    %222 = arith.cmpi eq, %176, %221 : vector<8x4x256xi32>
    %c8_31 = arith.constant 8 : index
    %223 = memref.load %arg2[%c8_31] : memref<16xf32, #tpu.memory_space<smem>>
    %224 = vector.broadcast %223 : f32 to vector<8x4x256xf32>
    %225 = arith.select %222, %224, %220 : vector<8x4x256xi1>, vector<8x4x256xf32>
    %c9_i32_32 = arith.constant 9 : i32
    %226 = vector.broadcast %c9_i32_32 : i32 to vector<8x4x256xi32>
    %227 = arith.cmpi eq, %176, %226 : vector<8x4x256xi32>
    %c9_33 = arith.constant 9 : index
    %228 = memref.load %arg2[%c9_33] : memref<16xf32, #tpu.memory_space<smem>>
    %229 = vector.broadcast %228 : f32 to vector<8x4x256xf32>
    %230 = arith.select %227, %229, %225 : vector<8x4x256xi1>, vector<8x4x256xf32>
    %c10_i32_34 = arith.constant 10 : i32
    %231 = vector.broadcast %c10_i32_34 : i32 to vector<8x4x256xi32>
    %232 = arith.cmpi eq, %176, %231 : vector<8x4x256xi32>
    %c10_35 = arith.constant 10 : index
    %233 = memref.load %arg2[%c10_35] : memref<16xf32, #tpu.memory_space<smem>>
    %234 = vector.broadcast %233 : f32 to vector<8x4x256xf32>
    %235 = arith.select %232, %234, %230 : vector<8x4x256xi1>, vector<8x4x256xf32>
    %c11_i32_36 = arith.constant 11 : i32
    %236 = vector.broadcast %c11_i32_36 : i32 to vector<8x4x256xi32>
    %237 = arith.cmpi eq, %176, %236 : vector<8x4x256xi32>
    %c11_37 = arith.constant 11 : index
    %238 = memref.load %arg2[%c11_37] : memref<16xf32, #tpu.memory_space<smem>>
    %239 = vector.broadcast %238 : f32 to vector<8x4x256xf32>
    %240 = arith.select %237, %239, %235 : vector<8x4x256xi1>, vector<8x4x256xf32>
    %cst_38 = arith.constant 0.000000e+00 : f32
    %241 = vector.broadcast %cst_38 : f32 to vector<8x4x256xf32>
    %c12_i32_39 = arith.constant 12 : i32
    %242 = vector.broadcast %c12_i32_39 : i32 to vector<8x4x256xi32>
    %243 = arith.cmpi eq, %176, %242 : vector<8x4x256xi32>
    %c12_40 = arith.constant 12 : index
    %244 = memref.load %arg2[%c12_40] : memref<16xf32, #tpu.memory_space<smem>>
    %245 = vector.broadcast %244 : f32 to vector<8x4x256xf32>
    %246 = arith.select %243, %245, %241 : vector<8x4x256xi1>, vector<8x4x256xf32>
    %c13_i32_41 = arith.constant 13 : i32
    %247 = vector.broadcast %c13_i32_41 : i32 to vector<8x4x256xi32>
    %248 = arith.cmpi eq, %176, %247 : vector<8x4x256xi32>
    %c13_42 = arith.constant 13 : index
    %249 = memref.load %arg2[%c13_42] : memref<16xf32, #tpu.memory_space<smem>>
    %250 = vector.broadcast %249 : f32 to vector<8x4x256xf32>
    %251 = arith.select %248, %250, %246 : vector<8x4x256xi1>, vector<8x4x256xf32>
    %c14_i32_43 = arith.constant 14 : i32
    %252 = vector.broadcast %c14_i32_43 : i32 to vector<8x4x256xi32>
    %253 = arith.cmpi eq, %176, %252 : vector<8x4x256xi32>
    %c14_44 = arith.constant 14 : index
    %254 = memref.load %arg2[%c14_44] : memref<16xf32, #tpu.memory_space<smem>>
    %255 = vector.broadcast %254 : f32 to vector<8x4x256xf32>
    %256 = arith.select %253, %255, %251 : vector<8x4x256xi1>, vector<8x4x256xf32>
    %c15_i32_45 = arith.constant 15 : i32
    %257 = vector.broadcast %c15_i32_45 : i32 to vector<8x4x256xi32>
    %258 = arith.cmpi eq, %176, %257 : vector<8x4x256xi32>
    %c15_46 = arith.constant 15 : index
    %259 = memref.load %arg2[%c15_46] : memref<16xf32, #tpu.memory_space<smem>>
    %260 = vector.broadcast %259 : f32 to vector<8x4x256xf32>
    %261 = arith.select %258, %260, %256 : vector<8x4x256xi1>, vector<8x4x256xf32>
    %262 = arith.addf %198, %219 : vector<8x4x256xf32>
    %263 = arith.addf %240, %261 : vector<8x4x256xf32>
    %264 = arith.addf %262, %263 : vector<8x4x256xf32>
    %265 = arith.mulf %264, %177 : vector<8x4x256xf32>
    %cst_47 = arith.constant dense<0xFF800000> : vector<8x256xf32>
    %266 = vector.multi_reduction <maximumf>, %265, %cst_47 [1] : vector<8x4x256xf32> to vector<8x256xf32>
    %c0_48 = arith.constant 0 : index
    %267 = memref.load %arg3[%c0_48] : memref<2xf32, #tpu.memory_space<smem>>
    %c1_49 = arith.constant 1 : index
    %268 = memref.load %arg3[%c1_49] : memref<2xf32, #tpu.memory_space<smem>>
    %269 = vector.broadcast %267 : f32 to vector<8x256xf32>
    %270 = arith.mulf %175, %269 : vector<8x256xf32>
    %c0_50 = arith.constant 0 : index
    %c0_51 = arith.constant 0 : index
    %c0_52 = arith.constant 0 : index
    %271 = vector.load %arg6[%c0_50, %c0_51, %c0_52] : memref<3x8x256xf32, #tpu.memory_space<vmem>>, vector<1x8x256xf32>
    %272 = vector.shape_cast %271 : vector<1x8x256xf32> to vector<8x256xf32>
    %273 = vector.shape_cast %270 : vector<8x256xf32> to vector<1x8x256xf32>
    tpu.vector_store %arg6[%c0_50, %c0_51, %c0_52], %273 {strides = array<i32>} : memref<3x8x256xf32, #tpu.memory_space<vmem>>, vector<1x8x256xf32>,
    %274 = vector.broadcast %268 : f32 to vector<8x256xf32>
    %275 = arith.mulf %266, %274 : vector<8x256xf32>
    %c1_53 = arith.constant 1 : index
    %c0_54 = arith.constant 0 : index
    %c0_55 = arith.constant 0 : index
    %276 = vector.load %arg6[%c1_53, %c0_54, %c0_55] : memref<3x8x256xf32, #tpu.memory_space<vmem>>, vector<1x8x256xf32>
    %277 = vector.shape_cast %276 : vector<1x8x256xf32> to vector<8x256xf32>
    %278 = vector.shape_cast %275 : vector<8x256xf32> to vector<1x8x256xf32>
    tpu.vector_store %arg6[%c1_53, %c0_54, %c0_55], %278 {strides = array<i32>} : memref<3x8x256xf32, #tpu.memory_space<vmem>>, vector<1x8x256xf32>,
    %279 = vector.broadcast %267 : f32 to vector<8x256xf32>
    %280 = arith.mulf %173, %279 : vector<8x256xf32>
    %c2_56 = arith.constant 2 : index
    %c0_57 = arith.constant 0 : index
    %c0_58 = arith.constant 0 : index
    %281 = vector.load %arg6[%c2_56, %c0_57, %c0_58] : memref<3x8x256xf32, #tpu.memory_space<vmem>>, vector<1x8x256xf32>
    %282 = vector.shape_cast %281 : vector<1x8x256xf32> to vector<8x256xf32>
    %283 = vector.shape_cast %280 : vector<8x256xf32> to vector<1x8x256xf32>
    tpu.vector_store %arg6[%c2_56, %c0_57, %c0_58], %283 {strides = array<i32>} : memref<3x8x256xf32, #tpu.memory_space<vmem>>, vector<1x8x256xf32>,
    return
  }
  func.func @transform_0(%arg0: i32) -> i32 {
    %c0_i32 = arith.constant 0 : i32
    %c0_i32_0 = arith.constant 0 : i32
    return %c0_i32 : i32
  }
  func.func @transform_1(%arg0: i32) -> i32 {
    %c0_i32 = arith.constant 0 : i32
    %c0_i32_0 = arith.constant 0 : i32
    return %c0_i32 : i32
  }
  func.func @transform_2(%arg0: i32) -> i32 {
    %c0_i32 = arith.constant 0 : i32
    %c0_i32_0 = arith.constant 0 : i32
    return %c0_i32 : i32
  }
  func.func @transform_3(%arg0: i32) -> (i32, i32, i32) {
    %c0_i32 = arith.constant 0 : i32
    %c0_i32_0 = arith.constant 0 : i32
    %c0_i32_1 = arith.constant 0 : i32
    return %arg0, %c0_i32, %c0_i32_0 : i32, i32, i32
  }
  func.func @transform_4(%arg0: i32) -> (i32, i32, i32) {
    %c0_i32 = arith.constant 0 : i32
    %c0_i32_0 = arith.constant 0 : i32
    %c0_i32_1 = arith.constant 0 : i32
    return %arg0, %c0_i32, %c0_i32_0 : i32, i32, i32
  }
  func.func @transform_5(%arg0: i32) -> (i32, i32, i32) {
    %c0_i32 = arith.constant 0 : i32
    %c0_i32_0 = arith.constant 0 : i32
    %c0_i32_1 = arith.constant 0 : i32
    return %c0_i32, %arg0, %c0_i32_0 : i32, i32, i32
  }
}

</mosaic_0001>

<llo_original>
// kernel: tpu_custom_call.1
$region0: #{tpu_custom_call.1}
  #allocation0 [shape = 'u32[]', space=smem, size = 0x4, offset = 0x4, fixed_abs, tag = 'smem constant byte address 0x4 - core index']
  #allocation1 [shape = 'u32[72,128]{1,0:T(1,128)}', space=vmem, size = 0x9000, scoped, tag = 'internal scratch']
  %s0 = inlined_call_operand.vmem [shape: f32[32], index: 0, kind: input, shape index: {}]
  %s1 = inlined_call_operand.vmem [shape: f32[16], index: 1, kind: input, shape index: {}]
  %s2 = inlined_call_operand.vmem [shape: f32[2], index: 2, kind: input, shape index: {}]
  %s3 = inlined_call_operand.vmem [shape: s32[8,12,256], index: 3, kind: input, shape index: {}]
  %s4 = inlined_call_operand.vmem [shape: f32[8,12,256], index: 4, kind: input, shape index: {}]
  %s5 = inlined_call_operand.hbm [shape: f32[3,8,256], index: 5, kind: output, shape index: {}]
  %s6 = sld [smem:[#allocation0]]
  $region42: #{tpu_custom_call.1} parent=0
    _
  %s8 = ssub.s32 1, %s6
  %s9 = scalar_select 0, %s8, %s6
  $region1: #{tpu_custom_call.1} parent=0
    #allocation2 [shape = 'u8[512]{0}', space=smem, size = 0x200, scoped, tag = 'input window, operand 0, single buffered']
    #allocation3 [shape = 's32[1]{0}', space=sflag, size = 0x4, scoped, tag = 'scoped memory for tpu_custom_call.1']
    #allocation4 [shape = 's32[1]{0}', space=sflag, size = 0x4, scoped, tag = 'scoped memory for tpu_custom_call.1']
    #allocation5 [shape = 'u8[512]{0}', space=smem, size = 0x200, scoped, tag = 'input window, operand 1, single buffered']
    #allocation6 [shape = 's32[1]{0}', space=sflag, size = 0x4, scoped, tag = 'scoped memory for tpu_custom_call.1']
    #allocation7 [shape = 'u8[512]{0}', space=smem, size = 0x200, scoped, tag = 'input window, operand 2, single buffered']
    #allocation8 [shape = 'u8[24576]{0}', space=vmem, size = 0x6000, scoped, tag = 'output window, operand 0, single buffered']
    %10 = vsyncpa [#allocation4], 0
    %11 = vsyncpa [#allocation6], 0
    %12 = vsyncpa [#allocation3], 0
    // Predicated region
    $region2: #{tpu_custom_call.1} parent=1 // pred_check
      _
    $region3: #{tpu_custom_call.1} parent=1 // pred_check_branch
      %14 = sbr.rel (0) target = $region5
    $region4: #{tpu_custom_call.1} parent=1 // pred_region
      %16 = vsyncadd [#allocation4], 0
      %s18 = sshll.u32 %s0, 4
      %s19 = int_to_ptr.vmem [resolvable:$true] %s18
      %21 = dma.vmem_to_smem %s19, 16, [#allocation2], [#allocation4]
    $region5: #{tpu_custom_call.1} parent=1 // pred_fallthru
      _
    // Predicated region
    $region6: #{tpu_custom_call.1} parent=1 // pred_check
      _
    $region7: #{tpu_custom_call.1} parent=1 // pred_check_branch
      %23 = sbr.rel (0) target = $region9
    $region8: #{tpu_custom_call.1} parent=1 // pred_region
      %25 = vsyncadd [#allocation6], 0
      %s27 = sshll.u32 %s1, 4
      %s28 = int_to_ptr.vmem [resolvable:$true] %s27
      %30 = dma.vmem_to_smem %s28, 16, [#allocation5], [#allocation6]
    $region9: #{tpu_custom_call.1} parent=1 // pred_fallthru
      _
    // Predicated region
    $region10: #{tpu_custom_call.1} parent=1 // pred_check
      _
    $region11: #{tpu_custom_call.1} parent=1 // pred_check_branch
      %32 = sbr.rel (0) target = $region13
    $region12: #{tpu_custom_call.1} parent=1 // pred_region
      %34 = vsyncadd [#allocation6], 0
      %s36 = sshll.u32 %s2, 4
      %s37 = int_to_ptr.vmem [resolvable:$true] %s36
      %39 = dma.vmem_to_smem %s37, 16, [#allocation7], [#allocation6]
    $region13: #{tpu_custom_call.1} parent=1 // pred_fallthru
      _
    // Predicated region
    $region14: #{tpu_custom_call.1} parent=1 // pred_check
      _
    $region15: #{tpu_custom_call.1} parent=1 // pred_check_branch
      %41 = sbr.rel (0) target = $region17
    $region16: #{tpu_custom_call.1} parent=1 // pred_region
      _
    $region17: #{tpu_custom_call.1} parent=1 // pred_fallthru
      _
    // Predicated region
    $region18: #{tpu_custom_call.1} parent=1 // pred_check
      _
    $region19: #{tpu_custom_call.1} parent=1 // pred_check_branch
      %43 = sbr.rel (0) target = $region21
    $region20: #{tpu_custom_call.1} parent=1 // pred_region
      _
    $region21: #{tpu_custom_call.1} parent=1 // pred_fallthru
      _
    // Predicated region
    $region22: #{tpu_custom_call.1} parent=1 // pred_check
      _
    $region23: #{tpu_custom_call.1} parent=1 // pred_check_branch
      %45 = sbr.rel (0) target = $region25
    $region24: #{tpu_custom_call.1} parent=1 // pred_region
      %47 = dma.done [#allocation4], 16
    $region25: #{tpu_custom_call.1} parent=1 // pred_fallthru
      _
    // Predicated region
    $region26: #{tpu_custom_call.1} parent=1 // pred_check
      _
    $region27: #{tpu_custom_call.1} parent=1 // pred_check_branch
      %49 = sbr.rel (0) target = $region29
    $region28: #{tpu_custom_call.1} parent=1 // pred_region
      %51 = dma.done [#allocation6], 16
    $region29: #{tpu_custom_call.1} parent=1 // pred_fallthru
      _
    // Predicated region
    $region30: #{tpu_custom_call.1} parent=1 // pred_check
      _
    $region31: #{tpu_custom_call.1} parent=1 // pred_check_branch
      %53 = sbr.rel (0) target = $region33
    $region32: #{tpu_custom_call.1} parent=1 // pred_region
      %55 = dma.done [#allocation6], 16
    $region33: #{tpu_custom_call.1} parent=1 // pred_fallthru
      _
    %56 = sfence
    %v57 = vld [vmem:[%s3] sm:$0xff]
    %v58 = vld [vmem:[%s3 + $0x8] sm:$0xff]
    %v59 = vld [vmem:[%s3 + $0x10] sm:$0xf]
    %v60 = vld [vmem:[%s3 + $0x18] sm:$0xf]
    %v61 = vld [vmem:[%s3 + $0x20] sm:$0xff]
    %v62 = vld [vmem:[%s3 + $0x28] sm:$0xff]
    %v63 = vld [vmem:[%s3 + $0x30] sm:$0xf]
    %v64 = vld [vmem:[%s3 + $0x38] sm:$0xf]
    %v65 = vld [vmem:[%s3 + $0x40] sm:$0xff]
    %v66 = vld [vmem:[%s3 + $0x48] sm:$0xff]
    %v67 = vld [vmem:[%s3 + $0x50] sm:$0xf]
    %v68 = vld [vmem:[%s3 + $0x58] sm:$0xf]
    %v69 = vld [vmem:[%s3 + $0x60] sm:$0xff]
    %v70 = vld [vmem:[%s3 + $0x68] sm:$0xff]
    %v71 = vld [vmem:[%s3 + $0x70] sm:$0xf]
    %v72 = vld [vmem:[%s3 + $0x78] sm:$0xf]
    %v73 = vld [vmem:[%s3 + $0x80] sm:$0xff]
    %v74 = vld [vmem:[%s3 + $0x88] sm:$0xff]
    %v75 = vld [vmem:[%s3 + $0x90] sm:$0xf]
    %v76 = vld [vmem:[%s3 + $0x98] sm:$0xf]
    %v77 = vld [vmem:[%s3 + $0xa0] sm:$0xff]
    %v78 = vld [vmem:[%s3 + $0xa8] sm:$0xff]
    %v79 = vld [vmem:[%s3 + $0xb0] sm:$0xf]
    %v80 = vld [vmem:[%s3 + $0xb8] sm:$0xf]
    %v81 = vld [vmem:[%s3 + $0xc0] sm:$0xff]
    %v82 = vld [vmem:[%s3 + $0xc8] sm:$0xff]
    %v83 = vld [vmem:[%s3 + $0xd0] sm:$0xf]
    %v84 = vld [vmem:[%s3 + $0xd8] sm:$0xf]
    %v85 = vld [vmem:[%s3 + $0xe0] sm:$0xff]
    %v86 = vld [vmem:[%s3 + $0xe8] sm:$0xff]
    %v87 = vld [vmem:[%s3 + $0xf0] sm:$0xf]
    %v88 = vld [vmem:[%s3 + $0xf8] sm:$0xf]
    %v89 = vld [vmem:[%s4] sm:$0xff]
    %v90 = vld [vmem:[%s4 + $0x8] sm:$0xff]
    %v91 = vld [vmem:[%s4 + $0x10] sm:$0xf]
    %v92 = vld [vmem:[%s4 + $0x18] sm:$0xf]
    %v93 = vld [vmem:[%s4 + $0x20] sm:$0xff]
    %v94 = vld [vmem:[%s4 + $0x28] sm:$0xff]
    %v95 = vld [vmem:[%s4 + $0x30] sm:$0xf]
    %v96 = vld [vmem:[%s4 + $0x38] sm:$0xf]
    %v97 = vld [vmem:[%s4 + $0x40] sm:$0xff]
    %v98 = vld [vmem:[%s4 + $0x48] sm:$0xff]
    %v99 = vld [vmem:[%s4 + $0x50] sm:$0xf]
    %v100 = vld [vmem:[%s4 + $0x58] sm:$0xf]
    %v101 = vld [vmem:[%s4 + $0x60] sm:$0xff]
    %v102 = vld [vmem:[%s4 + $0x68] sm:$0xff]
    %v103 = vld [vmem:[%s4 + $0x70] sm:$0xf]
    %v104 = vld [vmem:[%s4 + $0x78] sm:$0xf]
    %v105 = vld [vmem:[%s4 + $0x80] sm:$0xff]
    %v106 = vld [vmem:[%s4 + $0x88] sm:$0xff]
    %v107 = vld [vmem:[%s4 + $0x90] sm:$0xf]
    %v108 = vld [vmem:[%s4 + $0x98] sm:$0xf]
    %v109 = vld [vmem:[%s4 + $0xa0] sm:$0xff]
    %v110 = vld [vmem:[%s4 + $0xa8] sm:$0xff]
    %v111 = vld [vmem:[%s4 + $0xb0] sm:$0xf]
    %v112 = vld [vmem:[%s4 + $0xb8] sm:$0xf]
    %v113 = vld [vmem:[%s4 + $0xc0] sm:$0xff]
    %v114 = vld [vmem:[%s4 + $0xc8] sm:$0xff]
    %v115 = vld [vmem:[%s4 + $0xd0] sm:$0xf]
    %v116 = vld [vmem:[%s4 + $0xd8] sm:$0xf]
    %v117 = vld [vmem:[%s4 + $0xe0] sm:$0xff]
    %v118 = vld [vmem:[%s4 + $0xe8] sm:$0xff]
    %v119 = vld [vmem:[%s4 + $0xf0] sm:$0xf]
    %v120 = vld [vmem:[%s4 + $0xf8] sm:$0xf]
    %vm121 = vcmp.eq.s32.totalorder %v57, 0
    %vm122 = vcmp.eq.s32.totalorder %v58, 0
    %vm123 = vcmp.eq.s32.totalorder %v61, 0
    %vm124 = vcmp.eq.s32.totalorder %v62, 0
    %vm125 = vcmp.eq.s32.totalorder %v65, 0
    %vm126 = vcmp.eq.s32.totalorder %v66, 0
    %vm127 = vcmp.eq.s32.totalorder %v69, 0
    %vm128 = vcmp.eq.s32.totalorder %v70, 0
    %vm129 = vcmp.eq.s32.totalorder %v73, 0
    %vm130 = vcmp.eq.s32.totalorder %v74, 0
    %vm131 = vcmp.eq.s32.totalorder %v77, 0
    %vm132 = vcmp.eq.s32.totalorder %v78, 0
    %vm133 = vcmp.eq.s32.totalorder %v81, 0
    %vm134 = vcmp.eq.s32.totalorder %v82, 0
    %vm135 = vcmp.eq.s32.totalorder %v85, 0
    %vm136 = vcmp.eq.s32.totalorder %v86, 0
    %s137 = sld [smem:[#allocation2]]
    %v138 = vstv %s137
    %v139 = vsel %vm121, %v138, 0.0
    %v140 = vsel %vm122, %v138, 0.0
    %v141 = vsel %vm123, %v138, 0.0
    %v142 = vsel %vm124, %v138, 0.0
    %v143 = vsel %vm125, %v138, 0.0
    %v144 = vsel %vm126, %v138, 0.0
    %v145 = vsel %vm127, %v138, 0.0
    %v146 = vsel %vm128, %v138, 0.0
    %v147 = vsel %vm129, %v138, 0.0
    %v148 = vsel %vm130, %v138, 0.0
    %v149 = vsel %vm131, %v138, 0.0
    %v150 = vsel %vm132, %v138, 0.0
    %v151 = vsel %vm133, %v138, 0.0
    %v152 = vsel %vm134, %v138, 0.0
    %v153 = vsel %vm135, %v138, 0.0
    %v154 = vsel %vm136, %v138, 0.0
    %vm155 = vcmp.eq.s32.totalorder %v57, 1
    %vm156 = vcmp.eq.s32.totalorder %v58, 1
    %vm157 = vcmp.eq.s32.totalorder %v61, 1
    %vm158 = vcmp.eq.s32.totalorder %v62, 1
    %vm159 = vcmp.eq.s32.totalorder %v65, 1
    %vm160 = vcmp.eq.s32.totalorder %v66, 1
    %vm161 = vcmp.eq.s32.totalorder %v69, 1
    %vm162 = vcmp.eq.s32.totalorder %v70, 1
    %vm163 = vcmp.eq.s32.totalorder %v73, 1
    %vm164 = vcmp.eq.s32.totalorder %v74, 1
    %vm165 = vcmp.eq.s32.totalorder %v77, 1
    %vm166 = vcmp.eq.s32.totalorder %v78, 1
    %vm167 = vcmp.eq.s32.totalorder %v81, 1
    %vm168 = vcmp.eq.s32.totalorder %v82, 1
    %vm169 = vcmp.eq.s32.totalorder %v85, 1
    %vm170 = vcmp.eq.s32.totalorder %v86, 1
    %s171 = sld [smem:[#allocation2 + $0x1]]
    %v172 = vstv %s171
    %v173 = vsel %vm155, %v172, %v139
    %v174 = vsel %vm156, %v172, %v140
    %v175 = vsel %vm157, %v172, %v141
    %v176 = vsel %vm158, %v172, %v142
    %v177 = vsel %vm159, %v172, %v143
    %v178 = vsel %vm160, %v172, %v144
    %v179 = vsel %vm161, %v172, %v145
    %v180 = vsel %vm162, %v172, %v146
    %v181 = vsel %vm163, %v172, %v147
    %v182 = vsel %vm164, %v172, %v148
    %v183 = vsel %vm165, %v172, %v149
    %v184 = vsel %vm166, %v172, %v150
    %v185 = vsel %vm167, %v172, %v151
    %v186 = vsel %vm168, %v172, %v152
    %v187 = vsel %vm169, %v172, %v153
    %v188 = vsel %vm170, %v172, %v154
    %vm189 = vcmp.eq.s32.totalorder %v57, 2
    %vm190 = vcmp.eq.s32.totalorder %v58, 2
    %vm191 = vcmp.eq.s32.totalorder %v61, 2
    %vm192 = vcmp.eq.s32.totalorder %v62, 2
    %vm193 = vcmp.eq.s32.totalorder %v65, 2
    %vm194 = vcmp.eq.s32.totalorder %v66, 2
    %vm195 = vcmp.eq.s32.totalorder %v69, 2
    %vm196 = vcmp.eq.s32.totalorder %v70, 2
    %vm197 = vcmp.eq.s32.totalorder %v73, 2
    %vm198 = vcmp.eq.s32.totalorder %v74, 2
    %vm199 = vcmp.eq.s32.totalorder %v77, 2
    %vm200 = vcmp.eq.s32.totalorder %v78, 2
    %vm201 = vcmp.eq.s32.totalorder %v81, 2
    %vm202 = vcmp.eq.s32.totalorder %v82, 2
    %vm203 = vcmp.eq.s32.totalorder %v85, 2
    %vm204 = vcmp.eq.s32.totalorder %v86, 2
    %s205 = sld [smem:[#allocation2 + $0x2]]
    %v206 = vstv %s205
    %v207 = vsel %vm189, %v206, %v173
    %v208 = vsel %vm190, %v206, %v174
    %v209 = vsel %vm191, %v206, %v175
    %v210 = vsel %vm192, %v206, %v176
    %v211 = vsel %vm193, %v206, %v177
    %v212 = vsel %vm194, %v206, %v178
    %v213 = vsel %vm195, %v206, %v179
    %v214 = vsel %vm196, %v206, %v180
    %v215 = vsel %vm197, %v206, %v181
    %v216 = vsel %vm198, %v206, %v182
    %v217 = vsel %vm199, %v206, %v183
    %v218 = vsel %vm200, %v206, %v184
    %v219 = vsel %vm201, %v206, %v185
    %v220 = vsel %vm202, %v206, %v186
    %v221 = vsel %vm203, %v206, %v187
    %v222 = vsel %vm204, %v206, %v188
    %vm223 = vcmp.eq.s32.totalorder %v57, 3
    %vm224 = vcmp.eq.s32.totalorder %v58, 3
    %vm225 = vcmp.eq.s32.totalorder %v61, 3
    %vm226 = vcmp.eq.s32.totalorder %v62, 3
    %vm227 = vcmp.eq.s32.totalorder %v65, 3
    %vm228 = vcmp.eq.s32.totalorder %v66, 3
    %vm229 = vcmp.eq.s32.totalorder %v69, 3
    %vm230 = vcmp.eq.s32.totalorder %v70, 3
    %vm231 = vcmp.eq.s32.totalorder %v73, 3
    %vm232 = vcmp.eq.s32.totalorder %v74, 3
    %vm233 = vcmp.eq.s32.totalorder %v77, 3
    %vm234 = vcmp.eq.s32.totalorder %v78, 3
    %vm235 = vcmp.eq.s32.totalorder %v81, 3
    %vm236 = vcmp.eq.s32.totalorder %v82, 3
    %vm237 = vcmp.eq.s32.totalorder %v85, 3
    %vm238 = vcmp.eq.s32.totalorder %v86, 3
    %s239 = sld [smem:[#allocation2 + $0x3]]
    %v240 = vstv %s239
    %v241 = vsel %vm223, %v240, %v207
    %v242 = vsel %vm224, %v240, %v208
    %v243 = vsel %vm225, %v240, %v209
    %v244 = vsel %vm226, %v240, %v210
    %v245 = vsel %vm227, %v240, %v211
    %v246 = vsel %vm228, %v240, %v212
    %v247 = vsel %vm229, %v240, %v213
    %v248 = vsel %vm230, %v240, %v214
    %v249 = vsel %vm231, %v240, %v215
    %v250 = vsel %vm232, %v240, %v216
    %v251 = vsel %vm233, %v240, %v217
    %v252 = vsel %vm234, %v240, %v218
    %v253 = vsel %vm235, %v240, %v219
    %v254 = vsel %vm236, %v240, %v220
    %v255 = vsel %vm237, %v240, %v221
    %v256 = vsel %vm238, %v240, %v222
    %vm257 = vcmp.eq.s32.totalorder %v57, 4
    %vm258 = vcmp.eq.s32.totalorder %v58, 4
    %vm259 = vcmp.eq.s32.totalorder %v61, 4
    %vm260 = vcmp.eq.s32.totalorder %v62, 4
    %vm261 = vcmp.eq.s32.totalorder %v65, 4
    %vm262 = vcmp.eq.s32.totalorder %v66, 4
    %vm263 = vcmp.eq.s32.totalorder %v69, 4
    %vm264 = vcmp.eq.s32.totalorder %v70, 4
    %vm265 = vcmp.eq.s32.totalorder %v73, 4
    %vm266 = vcmp.eq.s32.totalorder %v74, 4
    %vm267 = vcmp.eq.s32.totalorder %v77, 4
    %vm268 = vcmp.eq.s32.totalorder %v78, 4
    %vm269 = vcmp.eq.s32.totalorder %v81, 4
    %vm270 = vcmp.eq.s32.totalorder %v82, 4
    %vm271 = vcmp.eq.s32.totalorder %v85, 4
    %vm272 = vcmp.eq.s32.totalorder %v86, 4
    %s273 = sld [smem:[#allocation2 + $0x4]]
    %v274 = vstv %s273
    %v275 = vsel %vm257, %v274, %v241
    %v276 = vsel %vm258, %v274, %v242
    %v277 = vsel %vm259, %v274, %v243
    %v278 = vsel %vm260, %v274, %v244
    %v279 = vsel %vm261, %v274, %v245
    %v280 = vsel %vm262, %v274, %v246
    %v281 = vsel %vm263, %v274, %v247
    %v282 = vsel %vm264, %v274, %v248
    %v283 = vsel %vm265, %v274, %v249
    %v284 = vsel %vm266, %v274, %v250
    %v285 = vsel %vm267, %v274, %v251
    %v286 = vsel %vm268, %v274, %v252
    %v287 = vsel %vm269, %v274, %v253
    %v288 = vsel %vm270, %v274, %v254
    %v289 = vsel %vm271, %v274, %v255
    %v290 = vsel %vm272, %v274, %v256
    %vm291 = vcmp.eq.s32.totalorder %v57, 5
    %vm292 = vcmp.eq.s32.totalorder %v58, 5
    %vm293 = vcmp.eq.s32.totalorder %v61, 5
    %vm294 = vcmp.eq.s32.totalorder %v62, 5
    %vm295 = vcmp.eq.s32.totalorder %v65, 5
    %vm296 = vcmp.eq.s32.totalorder %v66, 5
    %vm297 = vcmp.eq.s32.totalorder %v69, 5
    %vm298 = vcmp.eq.s32.totalorder %v70, 5
    %vm299 = vcmp.eq.s32.totalorder %v73, 5
    %vm300 = vcmp.eq.s32.totalorder %v74, 5
    %vm301 = vcmp.eq.s32.totalorder %v77, 5
    %vm302 = vcmp.eq.s32.totalorder %v78, 5
    %vm303 = vcmp.eq.s32.totalorder %v81, 5
    %vm304 = vcmp.eq.s32.totalorder %v82, 5
    %vm305 = vcmp.eq.s32.totalorder %v85, 5
    %vm306 = vcmp.eq.s32.totalorder %v86, 5
    %s307 = sld [smem:[#allocation2 + $0x5]]
    %v308 = vstv %s307
    %v309 = vsel %vm291, %v308, %v275
    %v310 = vsel %vm292, %v308, %v276
    %v311 = vsel %vm293, %v308, %v277
    %v312 = vsel %vm294, %v308, %v278
    %v313 = vsel %vm295, %v308, %v279
    %v314 = vsel %vm296, %v308, %v280
    %v315 = vsel %vm297, %v308, %v281
    %v316 = vsel %vm298, %v308, %v282
    %v317 = vsel %vm299, %v308, %v283
    %v318 = vsel %vm300, %v308, %v284
    %v319 = vsel %vm301, %v308, %v285
    %v320 = vsel %vm302, %v308, %v286
    %v321 = vsel %vm303, %v308, %v287
    %v322 = vsel %vm304, %v308, %v288
    %v323 = vsel %vm305, %v308, %v289
    %v324 = vsel %vm306, %v308, %v290
    %vm325 = vcmp.eq.s32.totalorder %v57, 6
    %vm326 = vcmp.eq.s32.totalorder %v58, 6
    %vm327 = vcmp.eq.s32.totalorder %v61, 6
    %vm328 = vcmp.eq.s32.totalorder %v62, 6
    %vm329 = vcmp.eq.s32.totalorder %v65, 6
    %vm330 = vcmp.eq.s32.totalorder %v66, 6
    %vm331 = vcmp.eq.s32.totalorder %v69, 6
    %vm332 = vcmp.eq.s32.totalorder %v70, 6
    %vm333 = vcmp.eq.s32.totalorder %v73, 6
    %vm334 = vcmp.eq.s32.totalorder %v74, 6
    %vm335 = vcmp.eq.s32.totalorder %v77, 6
    %vm336 = vcmp.eq.s32.totalorder %v78, 6
    %vm337 = vcmp.eq.s32.totalorder %v81, 6
    %vm338 = vcmp.eq.s32.totalorder %v82, 6
    %vm339 = vcmp.eq.s32.totalorder %v85, 6
    %vm340 = vcmp.eq.s32.totalorder %v86, 6
    %s341 = sld [smem:[#allocation2 + $0x6]]
    %v342 = vstv %s341
    %v343 = vsel %vm325, %v342, %v309
    %v344 = vsel %vm326, %v342, %v310
    %v345 = vsel %vm327, %v342, %v311
    %v346 = vsel %vm328, %v342, %v312
    %v347 = vsel %vm329, %v342, %v313
    %v348 = vsel %vm330, %v342, %v314
    %v349 = vsel %vm331, %v342, %v315
    %v350 = vsel %vm332, %v342, %v316
    %v351 = vsel %vm333, %v342, %v317
    %v352 = vsel %vm334, %v342, %v318
    %v353 = vsel %vm335, %v342, %v319
    %v354 = vsel %vm336, %v342, %v320
    %v355 = vsel %vm337, %v342, %v321
    %v356 = vsel %vm338, %v342, %v322
    %v357 = vsel %vm339, %v342, %v323
    %v358 = vsel %vm340, %v342, %v324
    %vm359 = vcmp.eq.s32.totalorder %v57, 7
    %vm360 = vcmp.eq.s32.totalorder %v58, 7
    %vm361 = vcmp.eq.s32.totalorder %v61, 7
    %vm362 = vcmp.eq.s32.totalorder %v62, 7
    %vm363 = vcmp.eq.s32.totalorder %v65, 7
    %vm364 = vcmp.eq.s32.totalorder %v66, 7
    %vm365 = vcmp.eq.s32.totalorder %v69, 7
    %vm366 = vcmp.eq.s32.totalorder %v70, 7
    %vm367 = vcmp.eq.s32.totalorder %v73, 7
    %vm368 = vcmp.eq.s32.totalorder %v74, 7
    %vm369 = vcmp.eq.s32.totalorder %v77, 7
    %vm370 = vcmp.eq.s32.totalorder %v78, 7
    %vm371 = vcmp.eq.s32.totalorder %v81, 7
    %vm372 = vcmp.eq.s32.totalorder %v82, 7
    %vm373 = vcmp.eq.s32.totalorder %v85, 7
    %vm374 = vcmp.eq.s32.totalorder %v86, 7
    %s375 = sld [smem:[#allocation2 + $0x7]]
    %v376 = vstv %s375
    %v377 = vsel %vm359, %v376, %v343
    %v378 = vsel %vm360, %v376, %v344
    %v379 = vsel %vm361, %v376, %v345
    %v380 = vsel %vm362, %v376, %v346
    %v381 = vsel %vm363, %v376, %v347
    %v382 = vsel %vm364, %v376, %v348
    %v383 = vsel %vm365, %v376, %v349
    %v384 = vsel %vm366, %v376, %v350
    %v385 = vsel %vm367, %v376, %v351
    %v386 = vsel %vm368, %v376, %v352
    %v387 = vsel %vm369, %v376, %v353
    %v388 = vsel %vm370, %v376, %v354
    %v389 = vsel %vm371, %v376, %v355
    %v390 = vsel %vm372, %v376, %v356
    %v391 = vsel %vm373, %v376, %v357
    %v392 = vsel %vm374, %v376, %v358
    %vm393 = vcmp.eq.s32.totalorder %v57, 8
    %vm394 = vcmp.eq.s32.totalorder %v58, 8
    %vm395 = vcmp.eq.s32.totalorder %v61, 8
    %vm396 = vcmp.eq.s32.totalorder %v62, 8
    %vm397 = vcmp.eq.s32.totalorder %v65, 8
    %vm398 = vcmp.eq.s32.totalorder %v66, 8
    %vm399 = vcmp.eq.s32.totalorder %v69, 8
    %vm400 = vcmp.eq.s32.totalorder %v70, 8
    %vm401 = vcmp.eq.s32.totalorder %v73, 8
    %vm402 = vcmp.eq.s32.totalorder %v74, 8
    %vm403 = vcmp.eq.s32.totalorder %v77, 8
    %vm404 = vcmp.eq.s32.totalorder %v78, 8
    %vm405 = vcmp.eq.s32.totalorder %v81, 8
    %vm406 = vcmp.eq.s32.totalorder %v82, 8
    %vm407 = vcmp.eq.s32.totalorder %v85, 8
    %vm408 = vcmp.eq.s32.totalorder %v86, 8
    %s409 = sld [smem:[#allocation2 + $0x8]]
    %v410 = vstv %s409
    %v411 = vsel %vm393, %v410, 0.0
    %v412 = vsel %vm394, %v410, 0.0
    %v413 = vsel %vm395, %v410, 0.0
    %v414 = vsel %vm396, %v410, 0.0
    %v415 = vsel %vm397, %v410, 0.0
    %v416 = vsel %vm398, %v410, 0.0
    %v417 = vsel %vm399, %v410, 0.0
    %v418 = vsel %vm400, %v410, 0.0
    %v419 = vsel %vm401, %v410, 0.0
    %v420 = vsel %vm402, %v410, 0.0
    %v421 = vsel %vm403, %v410, 0.0
    %v422 = vsel %vm404, %v410, 0.0
    %v423 = vsel %vm405, %v410, 0.0
    %v424 = vsel %vm406, %v410, 0.0
    %v425 = vsel %vm407, %v410, 0.0
    %v426 = vsel %vm408, %v410, 0.0
    %vm427 = vcmp.eq.s32.totalorder %v57, 9
    %vm428 = vcmp.eq.s32.totalorder %v58, 9
    %vm429 = vcmp.eq.s32.totalorder %v61, 9
    %vm430 = vcmp.eq.s32.totalorder %v62, 9
    %vm431 = vcmp.eq.s32.totalorder %v65, 9
    %vm432 = vcmp.eq.s32.totalorder %v66, 9
    %vm433 = vcmp.eq.s32.totalorder %v69, 9
    %vm434 = vcmp.eq.s32.totalorder %v70, 9
    %vm435 = vcmp.eq.s32.totalorder %v73, 9
    %vm436 = vcmp.eq.s32.totalorder %v74, 9
    %vm437 = vcmp.eq.s32.totalorder %v77, 9
    %vm438 = vcmp.eq.s32.totalorder %v78, 9
    %vm439 = vcmp.eq.s32.totalorder %v81, 9
    %vm440 = vcmp.eq.s32.totalorder %v82, 9
    %vm441 = vcmp.eq.s32.totalorder %v85, 9
    %vm442 = vcmp.eq.s32.totalorder %v86, 9
    %s443 = sld [smem:[#allocation2 + $0x9]]
    %v444 = vstv %s443
    %v445 = vsel %vm427, %v444, %v411
    %v446 = vsel %vm428, %v444, %v412
    %v447 = vsel %vm429, %v444, %v413
    %v448 = vsel %vm430, %v444, %v414
    %v449 = vsel %vm431, %v444, %v415
    %v450 = vsel %vm432, %v444, %v416
    %v451 = vsel %vm433, %v444, %v417
    %v452 = vsel %vm434, %v444, %v418
    %v453 = vsel %vm435, %v444, %v419
    %v454 = vsel %vm436, %v444, %v420
    %v455 = vsel %vm437, %v444, %v421
    %v456 = vsel %vm438, %v444, %v422
    %v457 = vsel %vm439, %v444, %v423
    %v458 = vsel %vm440, %v444, %v424
    %v459 = vsel %vm441, %v444, %v425
    %v460 = vsel %vm442, %v444, %v426
    %vm461 = vcmp.eq.s32.totalorder %v57, 10
    %vm462 = vcmp.eq.s32.totalorder %v58, 10
    %vm463 = vcmp.eq.s32.totalorder %v61, 10
    %vm464 = vcmp.eq.s32.totalorder %v62, 10
    %vm465 = vcmp.eq.s32.totalorder %v65, 10
    %vm466 = vcmp.eq.s32.totalorder %v66, 10
    %vm467 = vcmp.eq.s32.totalorder %v69, 10
    %vm468 = vcmp.eq.s32.totalorder %v70, 10
    %vm469 = vcmp.eq.s32.totalorder %v73, 10
    %vm470 = vcmp.eq.s32.totalorder %v74, 10
    %vm471 = vcmp.eq.s32.totalorder %v77, 10
    %vm472 = vcmp.eq.s32.totalorder %v78, 10
    %vm473 = vcmp.eq.s32.totalorder %v81, 10
    %vm474 = vcmp.eq.s32.totalorder %v82, 10
    %vm475 = vcmp.eq.s32.totalorder %v85, 10
    %vm476 = vcmp.eq.s32.totalorder %v86, 10
    %s477 = sld [smem:[#allocation2 + $0xa]]
    %v478 = vstv %s477
    %v479 = vsel %vm461, %v478, %v445
    %v480 = vsel %vm462, %v478, %v446
    %v481 = vsel %vm463, %v478, %v447
    %v482 = vsel %vm464, %v478, %v448
    %v483 = vsel %vm465, %v478, %v449
    %v484 = vsel %vm466, %v478, %v450
    %v485 = vsel %vm467, %v478, %v451
    %v486 = vsel %vm468, %v478, %v452
    %v487 = vsel %vm469, %v478, %v453
    %v488 = vsel %vm470, %v478, %v454
    %v489 = vsel %vm471, %v478, %v455
    %v490 = vsel %vm472, %v478, %v456
    %v491 = vsel %vm473, %v478, %v457
    %v492 = vsel %vm474, %v478, %v458
    %v493 = vsel %vm475, %v478, %v459
    %v494 = vsel %vm476, %v478, %v460
    %vm495 = vcmp.eq.s32.totalorder %v57, 11
    %vm496 = vcmp.eq.s32.totalorder %v58, 11
    %vm497 = vcmp.eq.s32.totalorder %v61, 11
    %vm498 = vcmp.eq.s32.totalorder %v62, 11
    %vm499 = vcmp.eq.s32.totalorder %v65, 11
    %vm500 = vcmp.eq.s32.totalorder %v66, 11
    %vm501 = vcmp.eq.s32.totalorder %v69, 11
    %vm502 = vcmp.eq.s32.totalorder %v70, 11
    %vm503 = vcmp.eq.s32.totalorder %v73, 11
    %vm504 = vcmp.eq.s32.totalorder %v74, 11
    %vm505 = vcmp.eq.s32.totalorder %v77, 11
    %vm506 = vcmp.eq.s32.totalorder %v78, 11
    %vm507 = vcmp.eq.s32.totalorder %v81, 11
    %vm508 = vcmp.eq.s32.totalorder %v82, 11
    %vm509 = vcmp.eq.s32.totalorder %v85, 11
    %vm510 = vcmp.eq.s32.totalorder %v86, 11
    %s511 = sld [smem:[#allocation2 + $0xb]]
    %v512 = vstv %s511
    %v513 = vsel %vm495, %v512, %v479
    %v514 = vsel %vm496, %v512, %v480
    %v515 = vsel %vm497, %v512, %v481
    %v516 = vsel %vm498, %v512, %v482
    %v517 = vsel %vm499, %v512, %v483
    %v518 = vsel %vm500, %v512, %v484
    %v519 = vsel %vm501, %v512, %v485
    %v520 = vsel %vm502, %v512, %v486
    %v521 = vsel %vm503, %v512, %v487
    %v522 = vsel %vm504, %v512, %v488
    %v523 = vsel %vm505, %v512, %v489
    %v524 = vsel %vm506, %v512, %v490
    %v525 = vsel %vm507, %v512, %v491
    %v526 = vsel %vm508, %v512, %v492
    %v527 = vsel %vm509, %v512, %v493
    %v528 = vsel %vm510, %v512, %v494
    %vm529 = vcmp.eq.s32.totalorder %v57, 12
    %vm530 = vcmp.eq.s32.totalorder %v58, 12
    %vm531 = vcmp.eq.s32.totalorder %v61, 12
    %vm532 = vcmp.eq.s32.totalorder %v62, 12
    %vm533 = vcmp.eq.s32.totalorder %v65, 12
    %vm534 = vcmp.eq.s32.totalorder %v66, 12
    %vm535 = vcmp.eq.s32.totalorder %v69, 12
    %vm536 = vcmp.eq.s32.totalorder %v70, 12
    %vm537 = vcmp.eq.s32.totalorder %v73, 12
    %vm538 = vcmp.eq.s32.totalorder %v74, 12
    %vm539 = vcmp.eq.s32.totalorder %v77, 12
    %vm540 = vcmp.eq.s32.totalorder %v78, 12
    %vm541 = vcmp.eq.s32.totalorder %v81, 12
    %vm542 = vcmp.eq.s32.totalorder %v82, 12
    %vm543 = vcmp.eq.s32.totalorder %v85, 12
    %vm544 = vcmp.eq.s32.totalorder %v86, 12
    %s545 = sld [smem:[#allocation2 + $0xc]]
    %v546 = vstv %s545
    %v547 = vsel %vm529, %v546, %v513
    %v548 = vsel %vm530, %v546, %v514
    %v549 = vsel %vm531, %v546, %v515
    %v550 = vsel %vm532, %v546, %v516
    %v551 = vsel %vm533, %v546, %v517
    %v552 = vsel %vm534, %v546, %v518
    %v553 = vsel %vm535, %v546, %v519
    %v554 = vsel %vm536, %v546, %v520
    %v555 = vsel %vm537, %v546, %v521
    %v556 = vsel %vm538, %v546, %v522
    %v557 = vsel %vm539, %v546, %v523
    %v558 = vsel %vm540, %v546, %v524
    %v559 = vsel %vm541, %v546, %v525
    %v560 = vsel %vm542, %v546, %v526
    %v561 = vsel %vm543, %v546, %v527
    %v562 = vsel %vm544, %v546, %v528
    %vm563 = vcmp.eq.s32.totalorder %v57, 13
    %vm564 = vcmp.eq.s32.totalorder %v58, 13
    %vm565 = vcmp.eq.s32.totalorder %v61, 13
    %vm566 = vcmp.eq.s32.totalorder %v62, 13
    %vm567 = vcmp.eq.s32.totalorder %v65, 13
    %vm568 = vcmp.eq.s32.totalorder %v66, 13
    %vm569 = vcmp.eq.s32.totalorder %v69, 13
    %vm570 = vcmp.eq.s32.totalorder %v70, 13
    %vm571 = vcmp.eq.s32.totalorder %v73, 13
    %vm572 = vcmp.eq.s32.totalorder %v74, 13
    %vm573 = vcmp.eq.s32.totalorder %v77, 13
    %vm574 = vcmp.eq.s32.totalorder %v78, 13
    %vm575 = vcmp.eq.s32.totalorder %v81, 13
    %vm576 = vcmp.eq.s32.totalorder %v82, 13
    %vm577 = vcmp.eq.s32.totalorder %v85, 13
    %vm578 = vcmp.eq.s32.totalorder %v86, 13
    %s579 = sld [smem:[#allocation2 + $0xd]]
    %v580 = vstv %s579
    %v581 = vsel %vm563, %v580, %v547
    %v582 = vsel %vm564, %v580, %v548
    %v583 = vsel %vm565, %v580, %v549
    %v584 = vsel %vm566, %v580, %v550
    %v585 = vsel %vm567, %v580, %v551
    %v586 = vsel %vm568, %v580, %v552
    %v587 = vsel %vm569, %v580, %v553
    %v588 = vsel %vm570, %v580, %v554
    %v589 = vsel %vm571, %v580, %v555
    %v590 = vsel %vm572, %v580, %v556
    %v591 = vsel %vm573, %v580, %v557
    %v592 = vsel %vm574, %v580, %v558
    %v593 = vsel %vm575, %v580, %v559
    %v594 = vsel %vm576, %v580, %v560
    %v595 = vsel %vm577, %v580, %v561
    %v596 = vsel %vm578, %v580, %v562
    %vm597 = vcmp.eq.s32.totalorder %v57, 14
    %vm598 = vcmp.eq.s32.totalorder %v58, 14
    %vm599 = vcmp.eq.s32.totalorder %v61, 14
    %vm600 = vcmp.eq.s32.totalorder %v62, 14
    %vm601 = vcmp.eq.s32.totalorder %v65, 14
    %vm602 = vcmp.eq.s32.totalorder %v66, 14
    %vm603 = vcmp.eq.s32.totalorder %v69, 14
    %vm604 = vcmp.eq.s32.totalorder %v70, 14
    %vm605 = vcmp.eq.s32.totalorder %v73, 14
    %vm606 = vcmp.eq.s32.totalorder %v74, 14
    %vm607 = vcmp.eq.s32.totalorder %v77, 14
    %vm608 = vcmp.eq.s32.totalorder %v78, 14
    %vm609 = vcmp.eq.s32.totalorder %v81, 14
    %vm610 = vcmp.eq.s32.totalorder %v82, 14
    %vm611 = vcmp.eq.s32.totalorder %v85, 14
    %vm612 = vcmp.eq.s32.totalorder %v86, 14
    %s613 = sld [smem:[#allocation2 + $0xe]]
    %v614 = vstv %s613
    %v615 = vsel %vm597, %v614, %v581
    %v616 = vsel %vm598, %v614, %v582
    %v617 = vsel %vm599, %v614, %v583
    %v618 = vsel %vm600, %v614, %v584
    %v619 = vsel %vm601, %v614, %v585
    %v620 = vsel %vm602, %v614, %v586
    %v621 = vsel %vm603, %v614, %v587
    %v622 = vsel %vm604, %v614, %v588
    %v623 = vsel %vm605, %v614, %v589
    %v624 = vsel %vm606, %v614, %v590
    %v625 = vsel %vm607, %v614, %v591
    %v626 = vsel %vm608, %v614, %v592
    %v627 = vsel %vm609, %v614, %v593
    %v628 = vsel %vm610, %v614, %v594
    %v629 = vsel %vm611, %v614, %v595
    %v630 = vsel %vm612, %v614, %v596
    %vm631 = vcmp.eq.s32.totalorder %v57, 15
    %vm632 = vcmp.eq.s32.totalorder %v58, 15
    %vm633 = vcmp.eq.s32.totalorder %v61, 15
    %vm634 = vcmp.eq.s32.totalorder %v62, 15
    %vm635 = vcmp.eq.s32.totalorder %v65, 15
    %vm636 = vcmp.eq.s32.totalorder %v66, 15
    %vm637 = vcmp.eq.s32.totalorder %v69, 15
    %vm638 = vcmp.eq.s32.totalorder %v70, 15
    %vm639 = vcmp.eq.s32.totalorder %v73, 15
    %vm640 = vcmp.eq.s32.totalorder %v74, 15
    %vm641 = vcmp.eq.s32.totalorder %v77, 15
    %vm642 = vcmp.eq.s32.totalorder %v78, 15
    %vm643 = vcmp.eq.s32.totalorder %v81, 15
    %vm644 = vcmp.eq.s32.totalorder %v82, 15
    %vm645 = vcmp.eq.s32.totalorder %v85, 15
    %vm646 = vcmp.eq.s32.totalorder %v86, 15
    %s647 = sld [smem:[#allocation2 + $0xf]]
    %v648 = vstv %s647
    %v649 = vsel %vm631, %v648, %v615
    %v650 = vsel %vm632, %v648, %v616
    %v651 = vsel %vm633, %v648, %v617
    %v652 = vsel %vm634, %v648, %v618
    %v653 = vsel %vm635, %v648, %v619
    %v654 = vsel %vm636, %v648, %v620
    %v655 = vsel %vm637, %v648, %v621
    %v656 = vsel %vm638, %v648, %v622
    %v657 = vsel %vm639, %v648, %v623
    %v658 = vsel %vm640, %v648, %v624
    %v659 = vsel %vm641, %v648, %v625
    %v660 = vsel %vm642, %v648, %v626
    %v661 = vsel %vm643, %v648, %v627
    %v662 = vsel %vm644, %v648, %v628
    %v663 = vsel %vm645, %v648, %v629
    %v664 = vsel %vm646, %v648, %v630
    %vm665 = vcmp.eq.s32.totalorder %v57, 16
    %vm666 = vcmp.eq.s32.totalorder %v58, 16
    %vm667 = vcmp.eq.s32.totalorder %v61, 16
    %vm668 = vcmp.eq.s32.totalorder %v62, 16
    %vm669 = vcmp.eq.s32.totalorder %v65, 16
    %vm670 = vcmp.eq.s32.totalorder %v66, 16
    %vm671 = vcmp.eq.s32.totalorder %v69, 16
    %vm672 = vcmp.eq.s32.totalorder %v70, 16
    %vm673 = vcmp.eq.s32.totalorder %v73, 16
    %vm674 = vcmp.eq.s32.totalorder %v74, 16
    %vm675 = vcmp.eq.s32.totalorder %v77, 16
    %vm676 = vcmp.eq.s32.totalorder %v78, 16
    %vm677 = vcmp.eq.s32.totalorder %v81, 16
    %vm678 = vcmp.eq.s32.totalorder %v82, 16
    %vm679 = vcmp.eq.s32.totalorder %v85, 16
    %vm680 = vcmp.eq.s32.totalorder %v86, 16
    %s681 = sld [smem:[#allocation2 + $0x10]]
    %v682 = vstv %s681
    %v683 = vsel %vm665, %v682, 0.0
    %v684 = vsel %vm666, %v682, 0.0
    %v685 = vsel %vm667, %v682, 0.0
    %v686 = vsel %vm668, %v682, 0.0
    %v687 = vsel %vm669, %v682, 0.0
    %v688 = vsel %vm670, %v682, 0.0
    %v689 = vsel %vm671, %v682, 0.0
    %v690 = vsel %vm672, %v682, 0.0
    %v691 = vsel %vm673, %v682, 0.0
    %v692 = vsel %vm674, %v682, 0.0
    %v693 = vsel %vm675, %v682, 0.0
    %v694 = vsel %vm676, %v682, 0.0
    %v695 = vsel %vm677, %v682, 0.0
    %v696 = vsel %vm678, %v682, 0.0
    %v697 = vsel %vm679, %v682, 0.0
    %v698 = vsel %vm680, %v682, 0.0
    %vm699 = vcmp.eq.s32.totalorder %v57, 17
    %vm700 = vcmp.eq.s32.totalorder %v58, 17
    %vm701 = vcmp.eq.s32.totalorder %v61, 17
    %vm702 = vcmp.eq.s32.totalorder %v62, 17
    %vm703 = vcmp.eq.s32.totalorder %v65, 17
    %vm704 = vcmp.eq.s32.totalorder %v66, 17
    %vm705 = vcmp.eq.s32.totalorder %v69, 17
    %vm706 = vcmp.eq.s32.totalorder %v70, 17
    %vm707 = vcmp.eq.s32.totalorder %v73, 17
    %vm708 = vcmp.eq.s32.totalorder %v74, 17
    %vm709 = vcmp.eq.s32.totalorder %v77, 17
    %vm710 = vcmp.eq.s32.totalorder %v78, 17
    %vm711 = vcmp.eq.s32.totalorder %v81, 17
    %vm712 = vcmp.eq.s32.totalorder %v82, 17
    %vm713 = vcmp.eq.s32.totalorder %v85, 17
    %vm714 = vcmp.eq.s32.totalorder %v86, 17
    %s715 = sld [smem:[#allocation2 + $0x11]]
    %v716 = vstv %s715
    %v717 = vsel %vm699, %v716, %v683
    %v718 = vsel %vm700, %v716, %v684
    %v719 = vsel %vm701, %v716, %v685
    %v720 = vsel %vm702, %v716, %v686
    %v721 = vsel %vm703, %v716, %v687
    %v722 = vsel %vm704, %v716, %v688
    %v723 = vsel %vm705, %v716, %v689
    %v724 = vsel %vm706, %v716, %v690
    %v725 = vsel %vm707, %v716, %v691
    %v726 = vsel %vm708, %v716, %v692
    %v727 = vsel %vm709, %v716, %v693
    %v728 = vsel %vm710, %v716, %v694
    %v729 = vsel %vm711, %v716, %v695
    %v730 = vsel %vm712, %v716, %v696
    %v731 = vsel %vm713, %v716, %v697
    %v732 = vsel %vm714, %v716, %v698
    %vm733 = vcmp.eq.s32.totalorder %v57, 18
    %vm734 = vcmp.eq.s32.totalorder %v58, 18
    %vm735 = vcmp.eq.s32.totalorder %v61, 18
    %vm736 = vcmp.eq.s32.totalorder %v62, 18
    %vm737 = vcmp.eq.s32.totalorder %v65, 18
    %vm738 = vcmp.eq.s32.totalorder %v66, 18
    %vm739 = vcmp.eq.s32.totalorder %v69, 18
    %vm740 = vcmp.eq.s32.totalorder %v70, 18
    %vm741 = vcmp.eq.s32.totalorder %v73, 18
    %vm742 = vcmp.eq.s32.totalorder %v74, 18
    %vm743 = vcmp.eq.s32.totalorder %v77, 18
    %vm744 = vcmp.eq.s32.totalorder %v78, 18
    %vm745 = vcmp.eq.s32.totalorder %v81, 18
    %vm746 = vcmp.eq.s32.totalorder %v82, 18
    %vm747 = vcmp.eq.s32.totalorder %v85, 18
    %vm748 = vcmp.eq.s32.totalorder %v86, 18
    %s749 = sld [smem:[#allocation2 + $0x12]]
    %v750 = vstv %s749
    %v751 = vsel %vm733, %v750, %v717
    %v752 = vsel %vm734, %v750, %v718
    %v753 = vsel %vm735, %v750, %v719
    %v754 = vsel %vm736, %v750, %v720
    %v755 = vsel %vm737, %v750, %v721
    %v756 = vsel %vm738, %v750, %v722
    %v757 = vsel %vm739, %v750, %v723
    %v758 = vsel %vm740, %v750, %v724
    %v759 = vsel %vm741, %v750, %v725
    %v760 = vsel %vm742, %v750, %v726
    %v761 = vsel %vm743, %v750, %v727
    %v762 = vsel %vm744, %v750, %v728
    %v763 = vsel %vm745, %v750, %v729
    %v764 = vsel %vm746, %v750, %v730
    %v765 = vsel %vm747, %v750, %v731
    %v766 = vsel %vm748, %v750, %v732
    %vm767 = vcmp.eq.s32.totalorder %v57, 19
    %vm768 = vcmp.eq.s32.totalorder %v58, 19
    %vm769 = vcmp.eq.s32.totalorder %v61, 19
    %vm770 = vcmp.eq.s32.totalorder %v62, 19
    %vm771 = vcmp.eq.s32.totalorder %v65, 19
    %vm772 = vcmp.eq.s32.totalorder %v66, 19
    %vm773 = vcmp.eq.s32.totalorder %v69, 19
    %vm774 = vcmp.eq.s32.totalorder %v70, 19
    %vm775 = vcmp.eq.s32.totalorder %v73, 19
    %vm776 = vcmp.eq.s32.totalorder %v74, 19
    %vm777 = vcmp.eq.s32.totalorder %v77, 19
    %vm778 = vcmp.eq.s32.totalorder %v78, 19
    %vm779 = vcmp.eq.s32.totalorder %v81, 19
    %vm780 = vcmp.eq.s32.totalorder %v82, 19
    %vm781 = vcmp.eq.s32.totalorder %v85, 19
    %vm782 = vcmp.eq.s32.totalorder %v86, 19
    %s783 = sld [smem:[#allocation2 + $0x13]]
    %v784 = vstv %s783
    %v785 = vsel %vm767, %v784, %v751
    %v786 = vsel %vm768, %v784, %v752
    %v787 = vsel %vm769, %v784, %v753
    %v788 = vsel %vm770, %v784, %v754
    %v789 = vsel %vm771, %v784, %v755
    %v790 = vsel %vm772, %v784, %v756
    %v791 = vsel %vm773, %v784, %v757
    %v792 = vsel %vm774, %v784, %v758
    %v793 = vsel %vm775, %v784, %v759
    %v794 = vsel %vm776, %v784, %v760
    %v795 = vsel %vm777, %v784, %v761
    %v796 = vsel %vm778, %v784, %v762
    %v797 = vsel %vm779, %v784, %v763
    %v798 = vsel %vm780, %v784, %v764
    %v799 = vsel %vm781, %v784, %v765
    %v800 = vsel %vm782, %v784, %v766
    %vm801 = vcmp.eq.s32.totalorder %v57, 20
    %vm802 = vcmp.eq.s32.totalorder %v58, 20
    %vm803 = vcmp.eq.s32.totalorder %v61, 20
    %vm804 = vcmp.eq.s32.totalorder %v62, 20
    %vm805 = vcmp.eq.s32.totalorder %v65, 20
    %vm806 = vcmp.eq.s32.totalorder %v66, 20
    %vm807 = vcmp.eq.s32.totalorder %v69, 20
    %vm808 = vcmp.eq.s32.totalorder %v70, 20
    %vm809 = vcmp.eq.s32.totalorder %v73, 20
    %vm810 = vcmp.eq.s32.totalorder %v74, 20
    %vm811 = vcmp.eq.s32.totalorder %v77, 20
    %vm812 = vcmp.eq.s32.totalorder %v78, 20
    %vm813 = vcmp.eq.s32.totalorder %v81, 20
    %vm814 = vcmp.eq.s32.totalorder %v82, 20
    %vm815 = vcmp.eq.s32.totalorder %v85, 20
    %vm816 = vcmp.eq.s32.totalorder %v86, 20
    %s817 = sld [smem:[#allocation2 + $0x14]]
    %v818 = vstv %s817
    %v819 = vsel %vm801, %v818, %v785
    %v820 = vsel %vm802, %v818, %v786
    %v821 = vsel %vm803, %v818, %v787
    %v822 = vsel %vm804, %v818, %v788
    %v823 = vsel %vm805, %v818, %v789
    %v824 = vsel %vm806, %v818, %v790
    %v825 = vsel %vm807, %v818, %v791
    %v826 = vsel %vm808, %v818, %v792
    %v827 = vsel %vm809, %v818, %v793
    %v828 = vsel %vm810, %v818, %v794
    %v829 = vsel %vm811, %v818, %v795
    %v830 = vsel %vm812, %v818, %v796
    %v831 = vsel %vm813, %v818, %v797
    %v832 = vsel %vm814, %v818, %v798
    %v833 = vsel %vm815, %v818, %v799
    %v834 = vsel %vm816, %v818, %v800
    %vm835 = vcmp.eq.s32.totalorder %v57, 21
    %vm836 = vcmp.eq.s32.totalorder %v58, 21
    %vm837 = vcmp.eq.s32.totalorder %v61, 21
    %vm838 = vcmp.eq.s32.totalorder %v62, 21
    %vm839 = vcmp.eq.s32.totalorder %v65, 21
    %vm840 = vcmp.eq.s32.totalorder %v66, 21
    %vm841 = vcmp.eq.s32.totalorder %v69, 21
    %vm842 = vcmp.eq.s32.totalorder %v70, 21
    %vm843 = vcmp.eq.s32.totalorder %v73, 21
    %vm844 = vcmp.eq.s32.totalorder %v74, 21
    %vm845 = vcmp.eq.s32.totalorder %v77, 21
    %vm846 = vcmp.eq.s32.totalorder %v78, 21
    %vm847 = vcmp.eq.s32.totalorder %v81, 21
    %vm848 = vcmp.eq.s32.totalorder %v82, 21
    %vm849 = vcmp.eq.s32.totalorder %v85, 21
    %vm850 = vcmp.eq.s32.totalorder %v86, 21
    %s851 = sld [smem:[#allocation2 + $0x15]]
    %v852 = vstv %s851
    %v853 = vsel %vm835, %v852, %v819
    %v854 = vsel %vm836, %v852, %v820
    %v855 = vsel %vm837, %v852, %v821
    %v856 = vsel %vm838, %v852, %v822
    %v857 = vsel %vm839, %v852, %v823
    %v858 = vsel %vm840, %v852, %v824
    %v859 = vsel %vm841, %v852, %v825
    %v860 = vsel %vm842, %v852, %v826
    %v861 = vsel %vm843, %v852, %v827
    %v862 = vsel %vm844, %v852, %v828
    %v863 = vsel %vm845, %v852, %v829
    %v864 = vsel %vm846, %v852, %v830
    %v865 = vsel %vm847, %v852, %v831
    %v866 = vsel %vm848, %v852, %v832
    %v867 = vsel %vm849, %v852, %v833
    %v868 = vsel %vm850, %v852, %v834
    %vm869 = vcmp.eq.s32.totalorder %v57, 22
    %vm870 = vcmp.eq.s32.totalorder %v58, 22
    %vm871 = vcmp.eq.s32.totalorder %v61, 22
    %vm872 = vcmp.eq.s32.totalorder %v62, 22
    %vm873 = vcmp.eq.s32.totalorder %v65, 22
    %vm874 = vcmp.eq.s32.totalorder %v66, 22
    %vm875 = vcmp.eq.s32.totalorder %v69, 22
    %vm876 = vcmp.eq.s32.totalorder %v70, 22
    %vm877 = vcmp.eq.s32.totalorder %v73, 22
    %vm878 = vcmp.eq.s32.totalorder %v74, 22
    %vm879 = vcmp.eq.s32.totalorder %v77, 22
    %vm880 = vcmp.eq.s32.totalorder %v78, 22
    %vm881 = vcmp.eq.s32.totalorder %v81, 22
    %vm882 = vcmp.eq.s32.totalorder %v82, 22
    %vm883 = vcmp.eq.s32.totalorder %v85, 22
    %vm884 = vcmp.eq.s32.totalorder %v86, 22
    %s885 = sld [smem:[#allocation2 + $0x16]]
    %v886 = vstv %s885
    %v887 = vsel %vm869, %v886, %v853
    %v888 = vsel %vm870, %v886, %v854
    %v889 = vsel %vm871, %v886, %v855
    %v890 = vsel %vm872, %v886, %v856
    %v891 = vsel %vm873, %v886, %v857
    %v892 = vsel %vm874, %v886, %v858
    %v893 = vsel %vm875, %v886, %v859
    %v894 = vsel %vm876, %v886, %v860
    %v895 = vsel %vm877, %v886, %v861
    %v896 = vsel %vm878, %v886, %v862
    %v897 = vsel %vm879, %v886, %v863
    %v898 = vsel %vm880, %v886, %v864
    %v899 = vsel %vm881, %v886, %v865
    %v900 = vsel %vm882, %v886, %v866
    %v901 = vsel %vm883, %v886, %v867
    %v902 = vsel %vm884, %v886, %v868
    %vm903 = vcmp.eq.s32.totalorder %v57, 23
    %vm904 = vcmp.eq.s32.totalorder %v58, 23
    %vm905 = vcmp.eq.s32.totalorder %v61, 23
    %vm906 = vcmp.eq.s32.totalorder %v62, 23
    %vm907 = vcmp.eq.s32.totalorder %v65, 23
    %vm908 = vcmp.eq.s32.totalorder %v66, 23
    %vm909 = vcmp.eq.s32.totalorder %v69, 23
    %vm910 = vcmp.eq.s32.totalorder %v70, 23
    %vm911 = vcmp.eq.s32.totalorder %v73, 23
    %vm912 = vcmp.eq.s32.totalorder %v74, 23
    %vm913 = vcmp.eq.s32.totalorder %v77, 23
    %vm914 = vcmp.eq.s32.totalorder %v78, 23
    %vm915 = vcmp.eq.s32.totalorder %v81, 23
    %vm916 = vcmp.eq.s32.totalorder %v82, 23
    %vm917 = vcmp.eq.s32.totalorder %v85, 23
    %vm918 = vcmp.eq.s32.totalorder %v86, 23
    %s919 = sld [smem:[#allocation2 + $0x17]]
    %v920 = vstv %s919
    %v921 = vsel %vm903, %v920, %v887
    %v922 = vsel %vm904, %v920, %v888
    %v923 = vsel %vm905, %v920, %v889
    %v924 = vsel %vm906, %v920, %v890
    %v925 = vsel %vm907, %v920, %v891
    %v926 = vsel %vm908, %v920, %v892
    %v927 = vsel %vm909, %v920, %v893
    %v928 = vsel %vm910, %v920, %v894
    %v929 = vsel %vm911, %v920, %v895
    %v930 = vsel %vm912, %v920, %v896
    %v931 = vsel %vm913, %v920, %v897
    %v932 = vsel %vm914, %v920, %v898
    %v933 = vsel %vm915, %v920, %v899
    %v934 = vsel %vm916, %v920, %v900
    %v935 = vsel %vm917, %v920, %v901
    %v936 = vsel %vm918, %v920, %v902
    %vm937 = vcmp.eq.s32.totalorder %v57, 24
    %vm938 = vcmp.eq.s32.totalorder %v58, 24
    %vm939 = vcmp.eq.s32.totalorder %v61, 24
    %vm940 = vcmp.eq.s32.totalorder %v62, 24
    %vm941 = vcmp.eq.s32.totalorder %v65, 24
    %vm942 = vcmp.eq.s32.totalorder %v66, 24
    %vm943 = vcmp.eq.s32.totalorder %v69, 24
    %vm944 = vcmp.eq.s32.totalorder %v70, 24
    %vm945 = vcmp.eq.s32.totalorder %v73, 24
    %vm946 = vcmp.eq.s32.totalorder %v74, 24
    %vm947 = vcmp.eq.s32.totalorder %v77, 24
    %vm948 = vcmp.eq.s32.totalorder %v78, 24
    %vm949 = vcmp.eq.s32.totalorder %v81, 24
    %vm950 = vcmp.eq.s32.totalorder %v82, 24
    %vm951 = vcmp.eq.s32.totalorder %v85, 24
    %vm952 = vcmp.eq.s32.totalorder %v86, 24
    %s953 = sld [smem:[#allocation2 + $0x18]]
    %v954 = vstv %s953
    %v955 = vsel %vm937, %v954, 0.0
    %v956 = vsel %vm938, %v954, 0.0
    %v957 = vsel %vm939, %v954, 0.0
    %v958 = vsel %vm940, %v954, 0.0
    %v959 = vsel %vm941, %v954, 0.0
    %v960 = vsel %vm942, %v954, 0.0
    %v961 = vsel %vm943, %v954, 0.0
    %v962 = vsel %vm944, %v954, 0.0
    %v963 = vsel %vm945, %v954, 0.0
    %v964 = vsel %vm946, %v954, 0.0
    %v965 = vsel %vm947, %v954, 0.0
    %v966 = vsel %vm948, %v954, 0.0
    %v967 = vsel %vm949, %v954, 0.0
    %v968 = vsel %vm950, %v954, 0.0
    %v969 = vsel %vm951, %v954, 0.0
    %v970 = vsel %vm952, %v954, 0.0
    %vm971 = vcmp.eq.s32.totalorder %v57, 25
    %vm972 = vcmp.eq.s32.totalorder %v58, 25
    %vm973 = vcmp.eq.s32.totalorder %v61, 25
    %vm974 = vcmp.eq.s32.totalorder %v62, 25
    %vm975 = vcmp.eq.s32.totalorder %v65, 25
    %vm976 = vcmp.eq.s32.totalorder %v66, 25
    %vm977 = vcmp.eq.s32.totalorder %v69, 25
    %vm978 = vcmp.eq.s32.totalorder %v70, 25
    %vm979 = vcmp.eq.s32.totalorder %v73, 25
    %vm980 = vcmp.eq.s32.totalorder %v74, 25
    %vm981 = vcmp.eq.s32.totalorder %v77, 25
    %vm982 = vcmp.eq.s32.totalorder %v78, 25
    %vm983 = vcmp.eq.s32.totalorder %v81, 25
    %vm984 = vcmp.eq.s32.totalorder %v82, 25
    %vm985 = vcmp.eq.s32.totalorder %v85, 25
    %vm986 = vcmp.eq.s32.totalorder %v86, 25
    %s987 = sld [smem:[#allocation2 + $0x19]]
    %v988 = vstv %s987
    %v989 = vsel %vm971, %v988, %v955
    %v990 = vsel %vm972, %v988, %v956
    %v991 = vsel %vm973, %v988, %v957
    %v992 = vsel %vm974, %v988, %v958
    %v993 = vsel %vm975, %v988, %v959
    %v994 = vsel %vm976, %v988, %v960
    %v995 = vsel %vm977, %v988, %v961
    %v996 = vsel %vm978, %v988, %v962
    %v997 = vsel %vm979, %v988, %v963
    %v998 = vsel %vm980, %v988, %v964
    %v999 = vsel %vm981, %v988, %v965
    %v1000 = vsel %vm982, %v988, %v966
    %v1001 = vsel %vm983, %v988, %v967
    %v1002 = vsel %vm984, %v988, %v968
    %v1003 = vsel %vm985, %v988, %v969
    %v1004 = vsel %vm986, %v988, %v970
    %vm1005 = vcmp.eq.s32.totalorder %v57, 26
    %vm1006 = vcmp.eq.s32.totalorder %v58, 26
    %vm1007 = vcmp.eq.s32.totalorder %v61, 26
    %vm1008 = vcmp.eq.s32.totalorder %v62, 26
    %vm1009 = vcmp.eq.s32.totalorder %v65, 26
    %vm1010 = vcmp.eq.s32.totalorder %v66, 26
    %vm1011 = vcmp.eq.s32.totalorder %v69, 26
    %vm1012 = vcmp.eq.s32.totalorder %v70, 26
    %vm1013 = vcmp.eq.s32.totalorder %v73, 26
    %vm1014 = vcmp.eq.s32.totalorder %v74, 26
    %vm1015 = vcmp.eq.s32.totalorder %v77, 26
    %vm1016 = vcmp.eq.s32.totalorder %v78, 26
    %vm1017 = vcmp.eq.s32.totalorder %v81, 26
    %vm1018 = vcmp.eq.s32.totalorder %v82, 26
    %vm1019 = vcmp.eq.s32.totalorder %v85, 26
    %vm1020 = vcmp.eq.s32.totalorder %v86, 26
    %s1021 = sld [smem:[#allocation2 + $0x1a]]
    %v1022 = vstv %s1021
    %v1023 = vsel %vm1005, %v1022, %v989
    %v1024 = vsel %vm1006, %v1022, %v990
    %v1025 = vsel %vm1007, %v1022, %v991
    %v1026 = vsel %vm1008, %v1022, %v992
    %v1027 = vsel %vm1009, %v1022, %v993
    %v1028 = vsel %vm1010, %v1022, %v994
    %v1029 = vsel %vm1011, %v1022, %v995
    %v1030 = vsel %vm1012, %v1022, %v996
    %v1031 = vsel %vm1013, %v1022, %v997
    %v1032 = vsel %vm1014, %v1022, %v998
    %v1033 = vsel %vm1015, %v1022, %v999
    %v1034 = vsel %vm1016, %v1022, %v1000
    %v1035 = vsel %vm1017, %v1022, %v1001
    %v1036 = vsel %vm1018, %v1022, %v1002
    %v1037 = vsel %vm1019, %v1022, %v1003
    %v1038 = vsel %vm1020, %v1022, %v1004
    %vm1039 = vcmp.eq.s32.totalorder %v57, 27
    %vm1040 = vcmp.eq.s32.totalorder %v58, 27
    %vm1041 = vcmp.eq.s32.totalorder %v61, 27
    %vm1042 = vcmp.eq.s32.totalorder %v62, 27
    %vm1043 = vcmp.eq.s32.totalorder %v65, 27
    %vm1044 = vcmp.eq.s32.totalorder %v66, 27
    %vm1045 = vcmp.eq.s32.totalorder %v69, 27
    %vm1046 = vcmp.eq.s32.totalorder %v70, 27
    %vm1047 = vcmp.eq.s32.totalorder %v73, 27
    %vm1048 = vcmp.eq.s32.totalorder %v74, 27
    %vm1049 = vcmp.eq.s32.totalorder %v77, 27
    %vm1050 = vcmp.eq.s32.totalorder %v78, 27
    %vm1051 = vcmp.eq.s32.totalorder %v81, 27
    %vm1052 = vcmp.eq.s32.totalorder %v82, 27
    %vm1053 = vcmp.eq.s32.totalorder %v85, 27
    %vm1054 = vcmp.eq.s32.totalorder %v86, 27
    %s1055 = sld [smem:[#allocation2 + $0x1b]]
    %v1056 = vstv %s1055
    %v1057 = vsel %vm1039, %v1056, %v1023
    %v1058 = vsel %vm1040, %v1056, %v1024
    %v1059 = vsel %vm1041, %v1056, %v1025
    %v1060 = vsel %vm1042, %v1056, %v1026
    %v1061 = vsel %vm1043, %v1056, %v1027
    %v1062 = vsel %vm1044, %v1056, %v1028
    %v1063 = vsel %vm1045, %v1056, %v1029
    %v1064 = vsel %vm1046, %v1056, %v1030
    %v1065 = vsel %vm1047, %v1056, %v1031
    %v1066 = vsel %vm1048, %v1056, %v1032
    %v1067 = vsel %vm1049, %v1056, %v1033
    %v1068 = vsel %vm1050, %v1056, %v1034
    %v1069 = vsel %vm1051, %v1056, %v1035
    %v1070 = vsel %vm1052, %v1056, %v1036
    %v1071 = vsel %vm1053, %v1056, %v1037
    %v1072 = vsel %vm1054, %v1056, %v1038
    %vm1073 = vcmp.eq.s32.totalorder %v57, 28
    %vm1074 = vcmp.eq.s32.totalorder %v58, 28
    %vm1075 = vcmp.eq.s32.totalorder %v61, 28
    %vm1076 = vcmp.eq.s32.totalorder %v62, 28
    %vm1077 = vcmp.eq.s32.totalorder %v65, 28
    %vm1078 = vcmp.eq.s32.totalorder %v66, 28
    %vm1079 = vcmp.eq.s32.totalorder %v69, 28
    %vm1080 = vcmp.eq.s32.totalorder %v70, 28
    %vm1081 = vcmp.eq.s32.totalorder %v73, 28
    %vm1082 = vcmp.eq.s32.totalorder %v74, 28
    %vm1083 = vcmp.eq.s32.totalorder %v77, 28
    %vm1084 = vcmp.eq.s32.totalorder %v78, 28
    %vm1085 = vcmp.eq.s32.totalorder %v81, 28
    %vm1086 = vcmp.eq.s32.totalorder %v82, 28
    %vm1087 = vcmp.eq.s32.totalorder %v85, 28
    %vm1088 = vcmp.eq.s32.totalorder %v86, 28
    %s1089 = sld [smem:[#allocation2 + $0x1c]]
    %v1090 = vstv %s1089
    %v1091 = vsel %vm1073, %v1090, %v1057
    %v1092 = vsel %vm1074, %v1090, %v1058
    %v1093 = vsel %vm1075, %v1090, %v1059
    %v1094 = vsel %vm1076, %v1090, %v1060
    %v1095 = vsel %vm1077, %v1090, %v1061
    %v1096 = vsel %vm1078, %v1090, %v1062
    %v1097 = vsel %vm1079, %v1090, %v1063
    %v1098 = vsel %vm1080, %v1090, %v1064
    %v1099 = vsel %vm1081, %v1090, %v1065
    %v1100 = vsel %vm1082, %v1090, %v1066
    %v1101 = vsel %vm1083, %v1090, %v1067
    %v1102 = vsel %vm1084, %v1090, %v1068
    %v1103 = vsel %vm1085, %v1090, %v1069
    %v1104 = vsel %vm1086, %v1090, %v1070
    %v1105 = vsel %vm1087, %v1090, %v1071
    %v1106 = vsel %vm1088, %v1090, %v1072
    %vm1107 = vcmp.eq.s32.totalorder %v57, 29
    %vm1108 = vcmp.eq.s32.totalorder %v58, 29
    %vm1109 = vcmp.eq.s32.totalorder %v61, 29
    %vm1110 = vcmp.eq.s32.totalorder %v62, 29
    %vm1111 = vcmp.eq.s32.totalorder %v65, 29
    %vm1112 = vcmp.eq.s32.totalorder %v66, 29
    %vm1113 = vcmp.eq.s32.totalorder %v69, 29
    %vm1114 = vcmp.eq.s32.totalorder %v70, 29
    %vm1115 = vcmp.eq.s32.totalorder %v73, 29
    %vm1116 = vcmp.eq.s32.totalorder %v74, 29
    %vm1117 = vcmp.eq.s32.totalorder %v77, 29
    %vm1118 = vcmp.eq.s32.totalorder %v78, 29
    %vm1119 = vcmp.eq.s32.totalorder %v81, 29
    %vm1120 = vcmp.eq.s32.totalorder %v82, 29
    %vm1121 = vcmp.eq.s32.totalorder %v85, 29
    %vm1122 = vcmp.eq.s32.totalorder %v86, 29
    %s1123 = sld [smem:[#allocation2 + $0x1d]]
    %v1124 = vstv %s1123
    %v1125 = vsel %vm1107, %v1124, %v1091
    %v1126 = vsel %vm1108, %v1124, %v1092
    %v1127 = vsel %vm1109, %v1124, %v1093
    %v1128 = vsel %vm1110, %v1124, %v1094
    %v1129 = vsel %vm1111, %v1124, %v1095
    %v1130 = vsel %vm1112, %v1124, %v1096
    %v1131 = vsel %vm1113, %v1124, %v1097
    %v1132 = vsel %vm1114, %v1124, %v1098
    %v1133 = vsel %vm1115, %v1124, %v1099
    %v1134 = vsel %vm1116, %v1124, %v1100
    %v1135 = vsel %vm1117, %v1124, %v1101
    %v1136 = vsel %vm1118, %v1124, %v1102
    %v1137 = vsel %vm1119, %v1124, %v1103
    %v1138 = vsel %vm1120, %v1124, %v1104
    %v1139 = vsel %vm1121, %v1124, %v1105
    %v1140 = vsel %vm1122, %v1124, %v1106
    %vm1141 = vcmp.eq.s32.totalorder %v57, 30
    %vm1142 = vcmp.eq.s32.totalorder %v58, 30
    %vm1143 = vcmp.eq.s32.totalorder %v61, 30
    %vm1144 = vcmp.eq.s32.totalorder %v62, 30
    %vm1145 = vcmp.eq.s32.totalorder %v65, 30
    %vm1146 = vcmp.eq.s32.totalorder %v66, 30
    %vm1147 = vcmp.eq.s32.totalorder %v69, 30
    %vm1148 = vcmp.eq.s32.totalorder %v70, 30
    %vm1149 = vcmp.eq.s32.totalorder %v73, 30
    %vm1150 = vcmp.eq.s32.totalorder %v74, 30
    %vm1151 = vcmp.eq.s32.totalorder %v77, 30
    %vm1152 = vcmp.eq.s32.totalorder %v78, 30
    %vm1153 = vcmp.eq.s32.totalorder %v81, 30
    %vm1154 = vcmp.eq.s32.totalorder %v82, 30
    %vm1155 = vcmp.eq.s32.totalorder %v85, 30
    %vm1156 = vcmp.eq.s32.totalorder %v86, 30
    %s1157 = sld [smem:[#allocation2 + $0x1e]]
    %v1158 = vstv %s1157
    %v1159 = vsel %vm1141, %v1158, %v1125
    %v1160 = vsel %vm1142, %v1158, %v1126
    %v1161 = vsel %vm1143, %v1158, %v1127
    %v1162 = vsel %vm1144, %v1158, %v1128
    %v1163 = vsel %vm1145, %v1158, %v1129
    %v1164 = vsel %vm1146, %v1158, %v1130
    %v1165 = vsel %vm1147, %v1158, %v1131
    %v1166 = vsel %vm1148, %v1158, %v1132
    %v1167 = vsel %vm1149, %v1158, %v1133
    %v1168 = vsel %vm1150, %v1158, %v1134
    %v1169 = vsel %vm1151, %v1158, %v1135
    %v1170 = vsel %vm1152, %v1158, %v1136
    %v1171 = vsel %vm1153, %v1158, %v1137
    %v1172 = vsel %vm1154, %v1158, %v1138
    %v1173 = vsel %vm1155, %v1158, %v1139
    %v1174 = vsel %vm1156, %v1158, %v1140
    %vm1175 = vcmp.eq.s32.totalorder %v57, 31
    %vm1176 = vcmp.eq.s32.totalorder %v58, 31
    %vm1177 = vcmp.eq.s32.totalorder %v61, 31
    %vm1178 = vcmp.eq.s32.totalorder %v62, 31
    %vm1179 = vcmp.eq.s32.totalorder %v65, 31
    %vm1180 = vcmp.eq.s32.totalorder %v66, 31
    %vm1181 = vcmp.eq.s32.totalorder %v69, 31
    %vm1182 = vcmp.eq.s32.totalorder %v70, 31
    %vm1183 = vcmp.eq.s32.totalorder %v73, 31
    %vm1184 = vcmp.eq.s32.totalorder %v74, 31
    %vm1185 = vcmp.eq.s32.totalorder %v77, 31
    %vm1186 = vcmp.eq.s32.totalorder %v78, 31
    %vm1187 = vcmp.eq.s32.totalorder %v81, 31
    %vm1188 = vcmp.eq.s32.totalorder %v82, 31
    %vm1189 = vcmp.eq.s32.totalorder %v85, 31
    %vm1190 = vcmp.eq.s32.totalorder %v86, 31
    %s1191 = sld [smem:[#allocation2 + $0x1f]]
    %v1192 = vstv %s1191
    %v1193 = vsel %vm1175, %v1192, %v1159
    %v1194 = vsel %vm1176, %v1192, %v1160
    %v1195 = vsel %vm1177, %v1192, %v1161
    %v1196 = vsel %vm1178, %v1192, %v1162
    %v1197 = vsel %vm1179, %v1192, %v1163
    %v1198 = vsel %vm1180, %v1192, %v1164
    %v1199 = vsel %vm1181, %v1192, %v1165
    %v1200 = vsel %vm1182, %v1192, %v1166
    %v1201 = vsel %vm1183, %v1192, %v1167
    %v1202 = vsel %vm1184, %v1192, %v1168
    %v1203 = vsel %vm1185, %v1192, %v1169
    %v1204 = vsel %vm1186, %v1192, %v1170
    %v1205 = vsel %vm1187, %v1192, %v1171
    %v1206 = vsel %vm1188, %v1192, %v1172
    %v1207 = vsel %vm1189, %v1192, %v1173
    %v1208 = vsel %vm1190, %v1192, %v1174
    %v1209 = vadd.f32 %v377, %v649
    %v1210 = vadd.f32 %v378, %v650
    %v1211 = vadd.f32 %v379, %v651
    %v1212 = vadd.f32 %v380, %v652
    %v1213 = vadd.f32 %v381, %v653
    %v1214 = vadd.f32 %v382, %v654
    %v1215 = vadd.f32 %v383, %v655
    %v1216 = vadd.f32 %v384, %v656
    %v1217 = vadd.f32 %v385, %v657
    %v1218 = vadd.f32 %v386, %v658
    %v1219 = vadd.f32 %v387, %v659
    %v1220 = vadd.f32 %v388, %v660
    %v1221 = vadd.f32 %v389, %v661
    %v1222 = vadd.f32 %v390, %v662
    %v1223 = vadd.f32 %v391, %v663
    %v1224 = vadd.f32 %v392, %v664
    %v1225 = vadd.f32 %v921, %v1193
    %v1226 = vadd.f32 %v922, %v1194
    %v1227 = vadd.f32 %v923, %v1195
    %v1228 = vadd.f32 %v924, %v1196
    %v1229 = vadd.f32 %v925, %v1197
    %v1230 = vadd.f32 %v926, %v1198
    %v1231 = vadd.f32 %v927, %v1199
    %v1232 = vadd.f32 %v928, %v1200
    %v1233 = vadd.f32 %v929, %v1201
    %v1234 = vadd.f32 %v930, %v1202
    %v1235 = vadd.f32 %v931, %v1203
    %v1236 = vadd.f32 %v932, %v1204
    %v1237 = vadd.f32 %v933, %v1205
    %v1238 = vadd.f32 %v934, %v1206
    %v1239 = vadd.f32 %v935, %v1207
    %v1240 = vadd.f32 %v936, %v1208
    %v1241 = vadd.f32 %v1209, %v1225
    %v1242 = vadd.f32 %v1210, %v1226
    %v1243 = vadd.f32 %v1211, %v1227
    %v1244 = vadd.f32 %v1212, %v1228
    %v1245 = vadd.f32 %v1213, %v1229
    %v1246 = vadd.f32 %v1214, %v1230
    %v1247 = vadd.f32 %v1215, %v1231
    %v1248 = vadd.f32 %v1216, %v1232
    %v1249 = vadd.f32 %v1217, %v1233
    %v1250 = vadd.f32 %v1218, %v1234
    %v1251 = vadd.f32 %v1219, %v1235
    %v1252 = vadd.f32 %v1220, %v1236
    %v1253 = vadd.f32 %v1221, %v1237
    %v1254 = vadd.f32 %v1222, %v1238
    %v1255 = vadd.f32 %v1223, %v1239
    %v1256 = vadd.f32 %v1224, %v1240
    %v1257 = vmul.f32 %v1241, %v89
    %v1258 = vmul.f32 %v1242, %v90
    %v1259 = vmul.f32 %v1243, %v93
    %v1260 = vmul.f32 %v1244, %v94
    %v1261 = vmul.f32 %v1245, %v97
    %v1262 = vmul.f32 %v1246, %v98
    %v1263 = vmul.f32 %v1247, %v101
    %v1264 = vmul.f32 %v1248, %v102
    %v1265 = vmul.f32 %v1249, %v105
    %v1266 = vmul.f32 %v1250, %v106
    %v1267 = vmul.f32 %v1251, %v109
    %v1268 = vmul.f32 %v1252, %v110
    %v1269 = vmul.f32 %v1253, %v113
    %v1270 = vmul.f32 %v1254, %v114
    %v1271 = vmul.f32 %v1255, %v117
    %v1272 = vmul.f32 %v1256, %v118
    %vm1273 = vcmask 1043456
    %v1274 = vsel %vm1273, %v1257, -inf
    %v1275 = vrot.slane %v1274, 4
    %v1276 = vmax.f32 %v1274, %v1275
    %v1277 = vrot.slane %v1276, 2
    %v1278 = vmax.f32 %v1276, %v1277
    %v1279 = vrot.slane %v1278, 1
    %v1280 = vmax.f32 %v1278, %v1279
    %v1281 = vsel %vm1273, %v1258, -inf
    %v1282 = vrot.slane %v1281, 4
    %v1283 = vmax.f32 %v1281, %v1282
    %v1284 = vrot.slane %v1283, 2
    %v1285 = vmax.f32 %v1283, %v1284
    %v1286 = vrot.slane %v1285, 1
    %v1287 = vmax.f32 %v1285, %v1286
    %v1288 = vsel %vm1273, %v1259, -inf
    %v1289 = vrot.slane %v1288, 4
    %v1290 = vmax.f32 %v1288, %v1289
    %v1291 = vrot.slane %v1290, 2
    %v1292 = vmax.f32 %v1290, %v1291
    %v1293 = vrot.slane %v1292, 1
    %v1294 = vmax.f32 %v1292, %v1293
    %v1295 = vsel %vm1273, %v1260, -inf
    %v1296 = vrot.slane %v1295, 4
    %v1297 = vmax.f32 %v1295, %v1296
    %v1298 = vrot.slane %v1297, 2
    %v1299 = vmax.f32 %v1297, %v1298
    %v1300 = vrot.slane %v1299, 1
    %v1301 = vmax.f32 %v1299, %v1300
    %v1302 = vsel %vm1273, %v1261, -inf
    %v1303 = vrot.slane %v1302, 4
    %v1304 = vmax.f32 %v1302, %v1303
    %v1305 = vrot.slane %v1304, 2
    %v1306 = vmax.f32 %v1304, %v1305
    %v1307 = vrot.slane %v1306, 1
    %v1308 = vmax.f32 %v1306, %v1307
    %v1309 = vsel %vm1273, %v1262, -inf
    %v1310 = vrot.slane %v1309, 4
    %v1311 = vmax.f32 %v1309, %v1310
    %v1312 = vrot.slane %v1311, 2
    %v1313 = vmax.f32 %v1311, %v1312
    %v1314 = vrot.slane %v1313, 1
    %v1315 = vmax.f32 %v1313, %v1314
    %v1316 = vsel %vm1273, %v1263, -inf
    %v1317 = vrot.slane %v1316, 4
    %v1318 = vmax.f32 %v1316, %v1317
    %v1319 = vrot.slane %v1318, 2
    %v1320 = vmax.f32 %v1318, %v1319
    %v1321 = vrot.slane %v1320, 1
    %v1322 = vmax.f32 %v1320, %v1321
    %v1323 = vsel %vm1273, %v1264, -inf
    %v1324 = vrot.slane %v1323, 4
    %v1325 = vmax.f32 %v1323, %v1324
    %v1326 = vrot.slane %v1325, 2
    %v1327 = vmax.f32 %v1325, %v1326
    %v1328 = vrot.slane %v1327, 1
    %v1329 = vmax.f32 %v1327, %v1328
    %v1330 = vsel %vm1273, %v1265, -inf
    %v1331 = vrot.slane %v1330, 4
    %v1332 = vmax.f32 %v1330, %v1331
    %v1333 = vrot.slane %v1332, 2
    %v1334 = vmax.f32 %v1332, %v1333
    %v1335 = vrot.slane %v1334, 1
    %v1336 = vmax.f32 %v1334, %v1335
    %v1337 = vsel %vm1273, %v1266, -inf
    %v1338 = vrot.slane %v1337, 4
    %v1339 = vmax.f32 %v1337, %v1338
    %v1340 = vrot.slane %v1339, 2
    %v1341 = vmax.f32 %v1339, %v1340
    %v1342 = vrot.slane %v1341, 1
    %v1343 = vmax.f32 %v1341, %v1342
    %v1344 = vsel %vm1273, %v1267, -inf
    %v1345 = vrot.slane %v1344, 4
    %v1346 = vmax.f32 %v1344, %v1345
    %v1347 = vrot.slane %v1346, 2
    %v1348 = vmax.f32 %v1346, %v1347
    %v1349 = vrot.slane %v1348, 1
    %v1350 = vmax.f32 %v1348, %v1349
    %v1351 = vsel %vm1273, %v1268, -inf
    %v1352 = vrot.slane %v1351, 4
    %v1353 = vmax.f32 %v1351, %v1352
    %v1354 = vrot.slane %v1353, 2
    %v1355 = vmax.f32 %v1353, %v1354
    %v1356 = vrot.slane %v1355, 1
    %v1357 = vmax.f32 %v1355, %v1356
    %v1358 = vsel %vm1273, %v1269, -inf
    %v1359 = vrot.slane %v1358, 4
    %v1360 = vmax.f32 %v1358, %v1359
    %v1361 = vrot.slane %v1360, 2
    %v1362 = vmax.f32 %v1360, %v1361
    %v1363 = vrot.slane %v1362, 1
    %v1364 = vmax.f32 %v1362, %v1363
    %v1365 = vsel %vm1273, %v1270, -inf
    %v1366 = vrot.slane %v1365, 4
    %v1367 = vmax.f32 %v1365, %v1366
    %v1368 = vrot.slane %v1367, 2
    %v1369 = vmax.f32 %v1367, %v1368
    %v1370 = vrot.slane %v1369, 1
    %v1371 = vmax.f32 %v1369, %v1370
    %v1372 = vsel %vm1273, %v1271, -inf
    %v1373 = vrot.slane %v1372, 4
    %v1374 = vmax.f32 %v1372, %v1373
    %v1375 = vrot.slane %v1374, 2
    %v1376 = vmax.f32 %v1374, %v1375
    %v1377 = vrot.slane %v1376, 1
    %v1378 = vmax.f32 %v1376, %v1377
    %v1379 = vsel %vm1273, %v1272, -inf
    %v1380 = vrot.slane %v1379, 4
    %v1381 = vmax.f32 %v1379, %v1380
    %v1382 = vrot.slane %v1381, 2
    %v1383 = vmax.f32 %v1381, %v1382
    %v1384 = vrot.slane %v1383, 1
    %v1385 = vmax.f32 %v1383, %v1384
    %vm1386 = vcmask 1047556
    %v1387 = vsel %vm1386, %v1257, -inf
    %v1388 = vrot.slane %v1387, 4
    %v1389 = vmax.f32 %v1387, %v1388
    %v1390 = vrot.slane %v1389, 2
    %v1391 = vmax.f32 %v1389, %v1390
    %v1392 = vrot.slane %v1391, 1
    %v1393 = vmax.f32 %v1391, %v1392
    %v1394 = vsel %vm1386, %v1258, -inf
    %v1395 = vrot.slane %v1394, 4
    %v1396 = vmax.f32 %v1394, %v1395
    %v1397 = vrot.slane %v1396, 2
    %v1398 = vmax.f32 %v1396, %v1397
    %v1399 = vrot.slane %v1398, 1
    %v1400 = vmax.f32 %v1398, %v1399
    %v1401 = vsel %vm1386, %v1259, -inf
    %v1402 = vrot.slane %v1401, 4
    %v1403 = vmax.f32 %v1401, %v1402
    %v1404 = vrot.slane %v1403, 2
    %v1405 = vmax.f32 %v1403, %v1404
    %v1406 = vrot.slane %v1405, 1
    %v1407 = vmax.f32 %v1405, %v1406
    %v1408 = vsel %vm1386, %v1260, -inf
    %v1409 = vrot.slane %v1408, 4
    %v1410 = vmax.f32 %v1408, %v1409
    %v1411 = vrot.slane %v1410, 2
    %v1412 = vmax.f32 %v1410, %v1411
    %v1413 = vrot.slane %v1412, 1
    %v1414 = vmax.f32 %v1412, %v1413
    %v1415 = vsel %vm1386, %v1261, -inf
    %v1416 = vrot.slane %v1415, 4
    %v1417 = vmax.f32 %v1415, %v1416
    %v1418 = vrot.slane %v1417, 2
    %v1419 = vmax.f32 %v1417, %v1418
    %v1420 = vrot.slane %v1419, 1
    %v1421 = vmax.f32 %v1419, %v1420
    %v1422 = vsel %vm1386, %v1262, -inf
    %v1423 = vrot.slane %v1422, 4
    %v1424 = vmax.f32 %v1422, %v1423
    %v1425 = vrot.slane %v1424, 2
    %v1426 = vmax.f32 %v1424, %v1425
    %v1427 = vrot.slane %v1426, 1
    %v1428 = vmax.f32 %v1426, %v1427
    %v1429 = vsel %vm1386, %v1263, -inf
    %v1430 = vrot.slane %v1429, 4
    %v1431 = vmax.f32 %v1429, %v1430
    %v1432 = vrot.slane %v1431, 2
    %v1433 = vmax.f32 %v1431, %v1432
    %v1434 = vrot.slane %v1433, 1
    %v1435 = vmax.f32 %v1433, %v1434
    %v1436 = vsel %vm1386, %v1264, -inf
    %v1437 = vrot.slane %v1436, 4
    %v1438 = vmax.f32 %v1436, %v1437
    %v1439 = vrot.slane %v1438, 2
    %v1440 = vmax.f32 %v1438, %v1439
    %v1441 = vrot.slane %v1440, 1
    %v1442 = vmax.f32 %v1440, %v1441
    %v1443 = vsel %vm1386, %v1265, -inf
    %v1444 = vrot.slane %v1443, 4
    %v1445 = vmax.f32 %v1443, %v1444
    %v1446 = vrot.slane %v1445, 2
    %v1447 = vmax.f32 %v1445, %v1446
    %v1448 = vrot.slane %v1447, 1
    %v1449 = vmax.f32 %v1447, %v1448
    %v1450 = vsel %vm1386, %v1266, -inf
    %v1451 = vrot.slane %v1450, 4
    %v1452 = vmax.f32 %v1450, %v1451
    %v1453 = vrot.slane %v1452, 2
    %v1454 = vmax.f32 %v1452, %v1453
    %v1455 = vrot.slane %v1454, 1
    %v1456 = vmax.f32 %v1454, %v1455
    %v1457 = vsel %vm1386, %v1267, -inf
    %v1458 = vrot.slane %v1457, 4
    %v1459 = vmax.f32 %v1457, %v1458
    %v1460 = vrot.slane %v1459, 2
    %v1461 = vmax.f32 %v1459, %v1460
    %v1462 = vrot.slane %v1461, 1
    %v1463 = vmax.f32 %v1461, %v1462
    %v1464 = vsel %vm1386, %v1268, -inf
    %v1465 = vrot.slane %v1464, 4
    %v1466 = vmax.f32 %v1464, %v1465
    %v1467 = vrot.slane %v1466, 2
    %v1468 = vmax.f32 %v1466, %v1467
    %v1469 = vrot.slane %v1468, 1
    %v1470 = vmax.f32 %v1468, %v1469
    %v1471 = vsel %vm1386, %v1269, -inf
    %v1472 = vrot.slane %v1471, 4
    %v1473 = vmax.f32 %v1471, %v1472
    %v1474 = vrot.slane %v1473, 2
    %v1475 = vmax.f32 %v1473, %v1474
    %v1476 = vrot.slane %v1475, 1
    %v1477 = vmax.f32 %v1475, %v1476
    %v1478 = vsel %vm1386, %v1270, -inf
    %v1479 = vrot.slane %v1478, 4
    %v1480 = vmax.f32 %v1478, %v1479
    %v1481 = vrot.slane %v1480, 2
    %v1482 = vmax.f32 %v1480, %v1481
    %v1483 = vrot.slane %v1482, 1
    %v1484 = vmax.f32 %v1482, %v1483
    %v1485 = vsel %vm1386, %v1271, -inf
    %v1486 = vrot.slane %v1485, 4
    %v1487 = vmax.f32 %v1485, %v1486
    %v1488 = vrot.slane %v1487, 2
    %v1489 = vmax.f32 %v1487, %v1488
    %v1490 = vrot.slane %v1489, 1
    %v1491 = vmax.f32 %v1489, %v1490
    %v1492 = vsel %vm1386, %v1272, -inf
    %v1493 = vrot.slane %v1492, 4
    %v1494 = vmax.f32 %v1492, %v1493
    %v1495 = vrot.slane %v1494, 2
    %v1496 = vmax.f32 %v1494, %v1495
    %v1497 = vrot.slane %v1496, 1
    %v1498 = vmax.f32 %v1496, %v1497
    %vm1499 = vcmp.eq.s32.totalorder %v59, 0
    %vm1500 = vcmp.eq.s32.totalorder %v60, 0
    %vm1501 = vcmp.eq.s32.totalorder %v63, 0
    %vm1502 = vcmp.eq.s32.totalorder %v64, 0
    %vm1503 = vcmp.eq.s32.totalorder %v67, 0
    %vm1504 = vcmp.eq.s32.totalorder %v68, 0
    %vm1505 = vcmp.eq.s32.totalorder %v71, 0
    %vm1506 = vcmp.eq.s32.totalorder %v72, 0
    %vm1507 = vcmp.eq.s32.totalorder %v75, 0
    %vm1508 = vcmp.eq.s32.totalorder %v76, 0
    %vm1509 = vcmp.eq.s32.totalorder %v79, 0
    %vm1510 = vcmp.eq.s32.totalorder %v80, 0
    %vm1511 = vcmp.eq.s32.totalorder %v83, 0
    %vm1512 = vcmp.eq.s32.totalorder %v84, 0
    %vm1513 = vcmp.eq.s32.totalorder %v87, 0
    %vm1514 = vcmp.eq.s32.totalorder %v88, 0
    %s1515 = sld [smem:[#allocation5]]
    %v1516 = vstv %s1515
    %v1517 = vsel %vm1499, %v1516, 0.0
    %v1518 = vsel %vm1500, %v1516, 0.0
    %v1519 = vsel %vm1501, %v1516, 0.0
    %v1520 = vsel %vm1502, %v1516, 0.0
    %v1521 = vsel %vm1503, %v1516, 0.0
    %v1522 = vsel %vm1504, %v1516, 0.0
    %v1523 = vsel %vm1505, %v1516, 0.0
    %v1524 = vsel %vm1506, %v1516, 0.0
    %v1525 = vsel %vm1507, %v1516, 0.0
    %v1526 = vsel %vm1508, %v1516, 0.0
    %v1527 = vsel %vm1509, %v1516, 0.0
    %v1528 = vsel %vm1510, %v1516, 0.0
    %v1529 = vsel %vm1511, %v1516, 0.0
    %v1530 = vsel %vm1512, %v1516, 0.0
    %v1531 = vsel %vm1513, %v1516, 0.0
    %v1532 = vsel %vm1514, %v1516, 0.0
    %vm1533 = vcmp.eq.s32.totalorder %v59, 1
    %vm1534 = vcmp.eq.s32.totalorder %v60, 1
    %vm1535 = vcmp.eq.s32.totalorder %v63, 1
    %vm1536 = vcmp.eq.s32.totalorder %v64, 1
    %vm1537 = vcmp.eq.s32.totalorder %v67, 1
    %vm1538 = vcmp.eq.s32.totalorder %v68, 1
    %vm1539 = vcmp.eq.s32.totalorder %v71, 1
    %vm1540 = vcmp.eq.s32.totalorder %v72, 1
    %vm1541 = vcmp.eq.s32.totalorder %v75, 1
    %vm1542 = vcmp.eq.s32.totalorder %v76, 1
    %vm1543 = vcmp.eq.s32.totalorder %v79, 1
    %vm1544 = vcmp.eq.s32.totalorder %v80, 1
    %vm1545 = vcmp.eq.s32.totalorder %v83, 1
    %vm1546 = vcmp.eq.s32.totalorder %v84, 1
    %vm1547 = vcmp.eq.s32.totalorder %v87, 1
    %vm1548 = vcmp.eq.s32.totalorder %v88, 1
    %s1549 = sld [smem:[#allocation5 + $0x1]]
    %v1550 = vstv %s1549
    %v1551 = vsel %vm1533, %v1550, %v1517
    %v1552 = vsel %vm1534, %v1550, %v1518
    %v1553 = vsel %vm1535, %v1550, %v1519
    %v1554 = vsel %vm1536, %v1550, %v1520
    %v1555 = vsel %vm1537, %v1550, %v1521
    %v1556 = vsel %vm1538, %v1550, %v1522
    %v1557 = vsel %vm1539, %v1550, %v1523
    %v1558 = vsel %vm1540, %v1550, %v1524
    %v1559 = vsel %vm1541, %v1550, %v1525
    %v1560 = vsel %vm1542, %v1550, %v1526
    %v1561 = vsel %vm1543, %v1550, %v1527
    %v1562 = vsel %vm1544, %v1550, %v1528
    %v1563 = vsel %vm1545, %v1550, %v1529
    %v1564 = vsel %vm1546, %v1550, %v1530
    %v1565 = vsel %vm1547, %v1550, %v1531
    %v1566 = vsel %vm1548, %v1550, %v1532
    %vm1567 = vcmp.eq.s32.totalorder %v59, 2
    %vm1568 = vcmp.eq.s32.totalorder %v60, 2
    %vm1569 = vcmp.eq.s32.totalorder %v63, 2
    %vm1570 = vcmp.eq.s32.totalorder %v64, 2
    %vm1571 = vcmp.eq.s32.totalorder %v67, 2
    %vm1572 = vcmp.eq.s32.totalorder %v68, 2
    %vm1573 = vcmp.eq.s32.totalorder %v71, 2
    %vm1574 = vcmp.eq.s32.totalorder %v72, 2
    %vm1575 = vcmp.eq.s32.totalorder %v75, 2
    %vm1576 = vcmp.eq.s32.totalorder %v76, 2
    %vm1577 = vcmp.eq.s32.totalorder %v79, 2
    %vm1578 = vcmp.eq.s32.totalorder %v80, 2
    %vm1579 = vcmp.eq.s32.totalorder %v83, 2
    %vm1580 = vcmp.eq.s32.totalorder %v84, 2
    %vm1581 = vcmp.eq.s32.totalorder %v87, 2
    %vm1582 = vcmp.eq.s32.totalorder %v88, 2
    %s1583 = sld [smem:[#allocation5 + $0x2]]
    %v1584 = vstv %s1583
    %v1585 = vsel %vm1567, %v1584, %v1551
    %v1586 = vsel %vm1568, %v1584, %v1552
    %v1587 = vsel %vm1569, %v1584, %v1553
    %v1588 = vsel %vm1570, %v1584, %v1554
    %v1589 = vsel %vm1571, %v1584, %v1555
    %v1590 = vsel %vm1572, %v1584, %v1556
    %v1591 = vsel %vm1573, %v1584, %v1557
    %v1592 = vsel %vm1574, %v1584, %v1558
    %v1593 = vsel %vm1575, %v1584, %v1559
    %v1594 = vsel %vm1576, %v1584, %v1560
    %v1595 = vsel %vm1577, %v1584, %v1561
    %v1596 = vsel %vm1578, %v1584, %v1562
    %v1597 = vsel %vm1579, %v1584, %v1563
    %v1598 = vsel %vm1580, %v1584, %v1564
    %v1599 = vsel %vm1581, %v1584, %v1565
    %v1600 = vsel %vm1582, %v1584, %v1566
    %vm1601 = vcmp.eq.s32.totalorder %v59, 3
    %vm1602 = vcmp.eq.s32.totalorder %v60, 3
    %vm1603 = vcmp.eq.s32.totalorder %v63, 3
    %vm1604 = vcmp.eq.s32.totalorder %v64, 3
    %vm1605 = vcmp.eq.s32.totalorder %v67, 3
    %vm1606 = vcmp.eq.s32.totalorder %v68, 3
    %vm1607 = vcmp.eq.s32.totalorder %v71, 3
    %vm1608 = vcmp.eq.s32.totalorder %v72, 3
    %vm1609 = vcmp.eq.s32.totalorder %v75, 3
    %vm1610 = vcmp.eq.s32.totalorder %v76, 3
    %vm1611 = vcmp.eq.s32.totalorder %v79, 3
    %vm1612 = vcmp.eq.s32.totalorder %v80, 3
    %vm1613 = vcmp.eq.s32.totalorder %v83, 3
    %vm1614 = vcmp.eq.s32.totalorder %v84, 3
    %vm1615 = vcmp.eq.s32.totalorder %v87, 3
    %vm1616 = vcmp.eq.s32.totalorder %v88, 3
    %s1617 = sld [smem:[#allocation5 + $0x3]]
    %v1618 = vstv %s1617
    %v1619 = vsel %vm1601, %v1618, %v1585
    %v1620 = vsel %vm1602, %v1618, %v1586
    %v1621 = vsel %vm1603, %v1618, %v1587
    %v1622 = vsel %vm1604, %v1618, %v1588
    %v1623 = vsel %vm1605, %v1618, %v1589
    %v1624 = vsel %vm1606, %v1618, %v1590
    %v1625 = vsel %vm1607, %v1618, %v1591
    %v1626 = vsel %vm1608, %v1618, %v1592
    %v1627 = vsel %vm1609, %v1618, %v1593
    %v1628 = vsel %vm1610, %v1618, %v1594
    %v1629 = vsel %vm1611, %v1618, %v1595
    %v1630 = vsel %vm1612, %v1618, %v1596
    %v1631 = vsel %vm1613, %v1618, %v1597
    %v1632 = vsel %vm1614, %v1618, %v1598
    %v1633 = vsel %vm1615, %v1618, %v1599
    %v1634 = vsel %vm1616, %v1618, %v1600
    %vm1635 = vcmp.eq.s32.totalorder %v59, 4
    %vm1636 = vcmp.eq.s32.totalorder %v60, 4
    %vm1637 = vcmp.eq.s32.totalorder %v63, 4
    %vm1638 = vcmp.eq.s32.totalorder %v64, 4
    %vm1639 = vcmp.eq.s32.totalorder %v67, 4
    %vm1640 = vcmp.eq.s32.totalorder %v68, 4
    %vm1641 = vcmp.eq.s32.totalorder %v71, 4
    %vm1642 = vcmp.eq.s32.totalorder %v72, 4
    %vm1643 = vcmp.eq.s32.totalorder %v75, 4
    %vm1644 = vcmp.eq.s32.totalorder %v76, 4
    %vm1645 = vcmp.eq.s32.totalorder %v79, 4
    %vm1646 = vcmp.eq.s32.totalorder %v80, 4
    %vm1647 = vcmp.eq.s32.totalorder %v83, 4
    %vm1648 = vcmp.eq.s32.totalorder %v84, 4
    %vm1649 = vcmp.eq.s32.totalorder %v87, 4
    %vm1650 = vcmp.eq.s32.totalorder %v88, 4
    %s1651 = sld [smem:[#allocation5 + $0x4]]
    %v1652 = vstv %s1651
    %v1653 = vsel %vm1635, %v1652, 0.0
    %v1654 = vsel %vm1636, %v1652, 0.0
    %v1655 = vsel %vm1637, %v1652, 0.0
    %v1656 = vsel %vm1638, %v1652, 0.0
    %v1657 = vsel %vm1639, %v1652, 0.0
    %v1658 = vsel %vm1640, %v1652, 0.0
    %v1659 = vsel %vm1641, %v1652, 0.0
    %v1660 = vsel %vm1642, %v1652, 0.0
    %v1661 = vsel %vm1643, %v1652, 0.0
    %v1662 = vsel %vm1644, %v1652, 0.0
    %v1663 = vsel %vm1645, %v1652, 0.0
    %v1664 = vsel %vm1646, %v1652, 0.0
    %v1665 = vsel %vm1647, %v1652, 0.0
    %v1666 = vsel %vm1648, %v1652, 0.0
    %v1667 = vsel %vm1649, %v1652, 0.0
    %v1668 = vsel %vm1650, %v1652, 0.0
    %vm1669 = vcmp.eq.s32.totalorder %v59, 5
    %vm1670 = vcmp.eq.s32.totalorder %v60, 5
    %vm1671 = vcmp.eq.s32.totalorder %v63, 5
    %vm1672 = vcmp.eq.s32.totalorder %v64, 5
    %vm1673 = vcmp.eq.s32.totalorder %v67, 5
    %vm1674 = vcmp.eq.s32.totalorder %v68, 5
    %vm1675 = vcmp.eq.s32.totalorder %v71, 5
    %vm1676 = vcmp.eq.s32.totalorder %v72, 5
    %vm1677 = vcmp.eq.s32.totalorder %v75, 5
    %vm1678 = vcmp.eq.s32.totalorder %v76, 5
    %vm1679 = vcmp.eq.s32.totalorder %v79, 5
    %vm1680 = vcmp.eq.s32.totalorder %v80, 5
    %vm1681 = vcmp.eq.s32.totalorder %v83, 5
    %vm1682 = vcmp.eq.s32.totalorder %v84, 5
    %vm1683 = vcmp.eq.s32.totalorder %v87, 5
    %vm1684 = vcmp.eq.s32.totalorder %v88, 5
    %s1685 = sld [smem:[#allocation5 + $0x5]]
    %v1686 = vstv %s1685
    %v1687 = vsel %vm1669, %v1686, %v1653
    %v1688 = vsel %vm1670, %v1686, %v1654
    %v1689 = vsel %vm1671, %v1686, %v1655
    %v1690 = vsel %vm1672, %v1686, %v1656
    %v1691 = vsel %vm1673, %v1686, %v1657
    %v1692 = vsel %vm1674, %v1686, %v1658
    %v1693 = vsel %vm1675, %v1686, %v1659
    %v1694 = vsel %vm1676, %v1686, %v1660
    %v1695 = vsel %vm1677, %v1686, %v1661
    %v1696 = vsel %vm1678, %v1686, %v1662
    %v1697 = vsel %vm1679, %v1686, %v1663
    %v1698 = vsel %vm1680, %v1686, %v1664
    %v1699 = vsel %vm1681, %v1686, %v1665
    %v1700 = vsel %vm1682, %v1686, %v1666
    %v1701 = vsel %vm1683, %v1686, %v1667
    %v1702 = vsel %vm1684, %v1686, %v1668
    %vm1703 = vcmp.eq.s32.totalorder %v59, 6
    %vm1704 = vcmp.eq.s32.totalorder %v60, 6
    %vm1705 = vcmp.eq.s32.totalorder %v63, 6
    %vm1706 = vcmp.eq.s32.totalorder %v64, 6
    %vm1707 = vcmp.eq.s32.totalorder %v67, 6
    %vm1708 = vcmp.eq.s32.totalorder %v68, 6
    %vm1709 = vcmp.eq.s32.totalorder %v71, 6
    %vm1710 = vcmp.eq.s32.totalorder %v72, 6
    %vm1711 = vcmp.eq.s32.totalorder %v75, 6
    %vm1712 = vcmp.eq.s32.totalorder %v76, 6
    %vm1713 = vcmp.eq.s32.totalorder %v79, 6
    %vm1714 = vcmp.eq.s32.totalorder %v80, 6
    %vm1715 = vcmp.eq.s32.totalorder %v83, 6
    %vm1716 = vcmp.eq.s32.totalorder %v84, 6
    %vm1717 = vcmp.eq.s32.totalorder %v87, 6
    %vm1718 = vcmp.eq.s32.totalorder %v88, 6
    %s1719 = sld [smem:[#allocation5 + $0x6]]
    %v1720 = vstv %s1719
    %v1721 = vsel %vm1703, %v1720, %v1687
    %v1722 = vsel %vm1704, %v1720, %v1688
    %v1723 = vsel %vm1705, %v1720, %v1689
    %v1724 = vsel %vm1706, %v1720, %v1690
    %v1725 = vsel %vm1707, %v1720, %v1691
    %v1726 = vsel %vm1708, %v1720, %v1692
    %v1727 = vsel %vm1709, %v1720, %v1693
    %v1728 = vsel %vm1710, %v1720, %v1694
    %v1729 = vsel %vm1711, %v1720, %v1695
    %v1730 = vsel %vm1712, %v1720, %v1696
    %v1731 = vsel %vm1713, %v1720, %v1697
    %v1732 = vsel %vm1714, %v1720, %v1698
    %v1733 = vsel %vm1715, %v1720, %v1699
    %v1734 = vsel %vm1716, %v1720, %v1700
    %v1735 = vsel %vm1717, %v1720, %v1701
    %v1736 = vsel %vm1718, %v1720, %v1702
    %vm1737 = vcmp.eq.s32.totalorder %v59, 7
    %vm1738 = vcmp.eq.s32.totalorder %v60, 7
    %vm1739 = vcmp.eq.s32.totalorder %v63, 7
    %vm1740 = vcmp.eq.s32.totalorder %v64, 7
    %vm1741 = vcmp.eq.s32.totalorder %v67, 7
    %vm1742 = vcmp.eq.s32.totalorder %v68, 7
    %vm1743 = vcmp.eq.s32.totalorder %v71, 7
    %vm1744 = vcmp.eq.s32.totalorder %v72, 7
    %vm1745 = vcmp.eq.s32.totalorder %v75, 7
    %vm1746 = vcmp.eq.s32.totalorder %v76, 7
    %vm1747 = vcmp.eq.s32.totalorder %v79, 7
    %vm1748 = vcmp.eq.s32.totalorder %v80, 7
    %vm1749 = vcmp.eq.s32.totalorder %v83, 7
    %vm1750 = vcmp.eq.s32.totalorder %v84, 7
    %vm1751 = vcmp.eq.s32.totalorder %v87, 7
    %vm1752 = vcmp.eq.s32.totalorder %v88, 7
    %s1753 = sld [smem:[#allocation5 + $0x7]]
    %v1754 = vstv %s1753
    %v1755 = vsel %vm1737, %v1754, %v1721
    %v1756 = vsel %vm1738, %v1754, %v1722
    %v1757 = vsel %vm1739, %v1754, %v1723
    %v1758 = vsel %vm1740, %v1754, %v1724
    %v1759 = vsel %vm1741, %v1754, %v1725
    %v1760 = vsel %vm1742, %v1754, %v1726
    %v1761 = vsel %vm1743, %v1754, %v1727
    %v1762 = vsel %vm1744, %v1754, %v1728
    %v1763 = vsel %vm1745, %v1754, %v1729
    %v1764 = vsel %vm1746, %v1754, %v1730
    %v1765 = vsel %vm1747, %v1754, %v1731
    %v1766 = vsel %vm1748, %v1754, %v1732
    %v1767 = vsel %vm1749, %v1754, %v1733
    %v1768 = vsel %vm1750, %v1754, %v1734
    %v1769 = vsel %vm1751, %v1754, %v1735
    %v1770 = vsel %vm1752, %v1754, %v1736
    %vm1771 = vcmp.eq.s32.totalorder %v59, 8
    %vm1772 = vcmp.eq.s32.totalorder %v60, 8
    %vm1773 = vcmp.eq.s32.totalorder %v63, 8
    %vm1774 = vcmp.eq.s32.totalorder %v64, 8
    %vm1775 = vcmp.eq.s32.totalorder %v67, 8
    %vm1776 = vcmp.eq.s32.totalorder %v68, 8
    %vm1777 = vcmp.eq.s32.totalorder %v71, 8
    %vm1778 = vcmp.eq.s32.totalorder %v72, 8
    %vm1779 = vcmp.eq.s32.totalorder %v75, 8
    %vm1780 = vcmp.eq.s32.totalorder %v76, 8
    %vm1781 = vcmp.eq.s32.totalorder %v79, 8
    %vm1782 = vcmp.eq.s32.totalorder %v80, 8
    %vm1783 = vcmp.eq.s32.totalorder %v83, 8
    %vm1784 = vcmp.eq.s32.totalorder %v84, 8
    %vm1785 = vcmp.eq.s32.totalorder %v87, 8
    %vm1786 = vcmp.eq.s32.totalorder %v88, 8
    %s1787 = sld [smem:[#allocation5 + $0x8]]
    %v1788 = vstv %s1787
    %v1789 = vsel %vm1771, %v1788, 0.0
    %v1790 = vsel %vm1772, %v1788, 0.0
    %v1791 = vsel %vm1773, %v1788, 0.0
    %v1792 = vsel %vm1774, %v1788, 0.0
    %v1793 = vsel %vm1775, %v1788, 0.0
    %v1794 = vsel %vm1776, %v1788, 0.0
    %v1795 = vsel %vm1777, %v1788, 0.0
    %v1796 = vsel %vm1778, %v1788, 0.0
    %v1797 = vsel %vm1779, %v1788, 0.0
    %v1798 = vsel %vm1780, %v1788, 0.0
    %v1799 = vsel %vm1781, %v1788, 0.0
    %v1800 = vsel %vm1782, %v1788, 0.0
    %v1801 = vsel %vm1783, %v1788, 0.0
    %v1802 = vsel %vm1784, %v1788, 0.0
    %v1803 = vsel %vm1785, %v1788, 0.0
    %v1804 = vsel %vm1786, %v1788, 0.0
    %vm1805 = vcmp.eq.s32.totalorder %v59, 9
    %vm1806 = vcmp.eq.s32.totalorder %v60, 9
    %vm1807 = vcmp.eq.s32.totalorder %v63, 9
    %vm1808 = vcmp.eq.s32.totalorder %v64, 9
    %vm1809 = vcmp.eq.s32.totalorder %v67, 9
    %vm1810 = vcmp.eq.s32.totalorder %v68, 9
    %vm1811 = vcmp.eq.s32.totalorder %v71, 9
    %vm1812 = vcmp.eq.s32.totalorder %v72, 9
    %vm1813 = vcmp.eq.s32.totalorder %v75, 9
    %vm1814 = vcmp.eq.s32.totalorder %v76, 9
    %vm1815 = vcmp.eq.s32.totalorder %v79, 9
    %vm1816 = vcmp.eq.s32.totalorder %v80, 9
    %vm1817 = vcmp.eq.s32.totalorder %v83, 9
    %vm1818 = vcmp.eq.s32.totalorder %v84, 9
    %vm1819 = vcmp.eq.s32.totalorder %v87, 9
    %vm1820 = vcmp.eq.s32.totalorder %v88, 9
    %s1821 = sld [smem:[#allocation5 + $0x9]]
    %v1822 = vstv %s1821
    %v1823 = vsel %vm1805, %v1822, %v1789
    %v1824 = vsel %vm1806, %v1822, %v1790
    %v1825 = vsel %vm1807, %v1822, %v1791
    %v1826 = vsel %vm1808, %v1822, %v1792
    %v1827 = vsel %vm1809, %v1822, %v1793
    %v1828 = vsel %vm1810, %v1822, %v1794
    %v1829 = vsel %vm1811, %v1822, %v1795
    %v1830 = vsel %vm1812, %v1822, %v1796
    %v1831 = vsel %vm1813, %v1822, %v1797
    %v1832 = vsel %vm1814, %v1822, %v1798
    %v1833 = vsel %vm1815, %v1822, %v1799
    %v1834 = vsel %vm1816, %v1822, %v1800
    %v1835 = vsel %vm1817, %v1822, %v1801
    %v1836 = vsel %vm1818, %v1822, %v1802
    %v1837 = vsel %vm1819, %v1822, %v1803
    %v1838 = vsel %vm1820, %v1822, %v1804
    %vm1839 = vcmp.eq.s32.totalorder %v59, 10
    %vm1840 = vcmp.eq.s32.totalorder %v60, 10
    %vm1841 = vcmp.eq.s32.totalorder %v63, 10
    %vm1842 = vcmp.eq.s32.totalorder %v64, 10
    %vm1843 = vcmp.eq.s32.totalorder %v67, 10
    %vm1844 = vcmp.eq.s32.totalorder %v68, 10
    %vm1845 = vcmp.eq.s32.totalorder %v71, 10
    %vm1846 = vcmp.eq.s32.totalorder %v72, 10
    %vm1847 = vcmp.eq.s32.totalorder %v75, 10
    %vm1848 = vcmp.eq.s32.totalorder %v76, 10
    %vm1849 = vcmp.eq.s32.totalorder %v79, 10
    %vm1850 = vcmp.eq.s32.totalorder %v80, 10
    %vm1851 = vcmp.eq.s32.totalorder %v83, 10
    %vm1852 = vcmp.eq.s32.totalorder %v84, 10
    %vm1853 = vcmp.eq.s32.totalorder %v87, 10
    %vm1854 = vcmp.eq.s32.totalorder %v88, 10
    %s1855 = sld [smem:[#allocation5 + $0xa]]
    %v1856 = vstv %s1855
    %v1857 = vsel %vm1839, %v1856, %v1823
    %v1858 = vsel %vm1840, %v1856, %v1824
    %v1859 = vsel %vm1841, %v1856, %v1825
    %v1860 = vsel %vm1842, %v1856, %v1826
    %v1861 = vsel %vm1843, %v1856, %v1827
    %v1862 = vsel %vm1844, %v1856, %v1828
    %v1863 = vsel %vm1845, %v1856, %v1829
    %v1864 = vsel %vm1846, %v1856, %v1830
    %v1865 = vsel %vm1847, %v1856, %v1831
    %v1866 = vsel %vm1848, %v1856, %v1832
    %v1867 = vsel %vm1849, %v1856, %v1833
    %v1868 = vsel %vm1850, %v1856, %v1834
    %v1869 = vsel %vm1851, %v1856, %v1835
    %v1870 = vsel %vm1852, %v1856, %v1836
    %v1871 = vsel %vm1853, %v1856, %v1837
    %v1872 = vsel %vm1854, %v1856, %v1838
    %vm1873 = vcmp.eq.s32.totalorder %v59, 11
    %vm1874 = vcmp.eq.s32.totalorder %v60, 11
    %vm1875 = vcmp.eq.s32.totalorder %v63, 11
    %vm1876 = vcmp.eq.s32.totalorder %v64, 11
    %vm1877 = vcmp.eq.s32.totalorder %v67, 11
    %vm1878 = vcmp.eq.s32.totalorder %v68, 11
    %vm1879 = vcmp.eq.s32.totalorder %v71, 11
    %vm1880 = vcmp.eq.s32.totalorder %v72, 11
    %vm1881 = vcmp.eq.s32.totalorder %v75, 11
    %vm1882 = vcmp.eq.s32.totalorder %v76, 11
    %vm1883 = vcmp.eq.s32.totalorder %v79, 11
    %vm1884 = vcmp.eq.s32.totalorder %v80, 11
    %vm1885 = vcmp.eq.s32.totalorder %v83, 11
    %vm1886 = vcmp.eq.s32.totalorder %v84, 11
    %vm1887 = vcmp.eq.s32.totalorder %v87, 11
    %vm1888 = vcmp.eq.s32.totalorder %v88, 11
    %s1889 = sld [smem:[#allocation5 + $0xb]]
    %v1890 = vstv %s1889
    %v1891 = vsel %vm1873, %v1890, %v1857
    %v1892 = vsel %vm1874, %v1890, %v1858
    %v1893 = vsel %vm1875, %v1890, %v1859
    %v1894 = vsel %vm1876, %v1890, %v1860
    %v1895 = vsel %vm1877, %v1890, %v1861
    %v1896 = vsel %vm1878, %v1890, %v1862
    %v1897 = vsel %vm1879, %v1890, %v1863
    %v1898 = vsel %vm1880, %v1890, %v1864
    %v1899 = vsel %vm1881, %v1890, %v1865
    %v1900 = vsel %vm1882, %v1890, %v1866
    %v1901 = vsel %vm1883, %v1890, %v1867
    %v1902 = vsel %vm1884, %v1890, %v1868
    %v1903 = vsel %vm1885, %v1890, %v1869
    %v1904 = vsel %vm1886, %v1890, %v1870
    %v1905 = vsel %vm1887, %v1890, %v1871
    %v1906 = vsel %vm1888, %v1890, %v1872
    %vm1907 = vcmp.eq.s32.totalorder %v59, 12
    %vm1908 = vcmp.eq.s32.totalorder %v60, 12
    %vm1909 = vcmp.eq.s32.totalorder %v63, 12
    %vm1910 = vcmp.eq.s32.totalorder %v64, 12
    %vm1911 = vcmp.eq.s32.totalorder %v67, 12
    %vm1912 = vcmp.eq.s32.totalorder %v68, 12
    %vm1913 = vcmp.eq.s32.totalorder %v71, 12
    %vm1914 = vcmp.eq.s32.totalorder %v72, 12
    %vm1915 = vcmp.eq.s32.totalorder %v75, 12
    %vm1916 = vcmp.eq.s32.totalorder %v76, 12
    %vm1917 = vcmp.eq.s32.totalorder %v79, 12
    %vm1918 = vcmp.eq.s32.totalorder %v80, 12
    %vm1919 = vcmp.eq.s32.totalorder %v83, 12
    %vm1920 = vcmp.eq.s32.totalorder %v84, 12
    %vm1921 = vcmp.eq.s32.totalorder %v87, 12
    %vm1922 = vcmp.eq.s32.totalorder %v88, 12
    %s1923 = sld [smem:[#allocation5 + $0xc]]
    %v1924 = vstv %s1923
    %v1925 = vsel %vm1907, %v1924, 0.0
    %v1926 = vsel %vm1908, %v1924, 0.0
    %v1927 = vsel %vm1909, %v1924, 0.0
    %v1928 = vsel %vm1910, %v1924, 0.0
    %v1929 = vsel %vm1911, %v1924, 0.0
    %v1930 = vsel %vm1912, %v1924, 0.0
    %v1931 = vsel %vm1913, %v1924, 0.0
    %v1932 = vsel %vm1914, %v1924, 0.0
    %v1933 = vsel %vm1915, %v1924, 0.0
    %v1934 = vsel %vm1916, %v1924, 0.0
    %v1935 = vsel %vm1917, %v1924, 0.0
    %v1936 = vsel %vm1918, %v1924, 0.0
    %v1937 = vsel %vm1919, %v1924, 0.0
    %v1938 = vsel %vm1920, %v1924, 0.0
    %v1939 = vsel %vm1921, %v1924, 0.0
    %v1940 = vsel %vm1922, %v1924, 0.0
    %vm1941 = vcmp.eq.s32.totalorder %v59, 13
    %vm1942 = vcmp.eq.s32.totalorder %v60, 13
    %vm1943 = vcmp.eq.s32.totalorder %v63, 13
    %vm1944 = vcmp.eq.s32.totalorder %v64, 13
    %vm1945 = vcmp.eq.s32.totalorder %v67, 13
    %vm1946 = vcmp.eq.s32.totalorder %v68, 13
    %vm1947 = vcmp.eq.s32.totalorder %v71, 13
    %vm1948 = vcmp.eq.s32.totalorder %v72, 13
    %vm1949 = vcmp.eq.s32.totalorder %v75, 13
    %vm1950 = vcmp.eq.s32.totalorder %v76, 13
    %vm1951 = vcmp.eq.s32.totalorder %v79, 13
    %vm1952 = vcmp.eq.s32.totalorder %v80, 13
    %vm1953 = vcmp.eq.s32.totalorder %v83, 13
    %vm1954 = vcmp.eq.s32.totalorder %v84, 13
    %vm1955 = vcmp.eq.s32.totalorder %v87, 13
    %vm1956 = vcmp.eq.s32.totalorder %v88, 13
    %s1957 = sld [smem:[#allocation5 + $0xd]]
    %v1958 = vstv %s1957
    %v1959 = vsel %vm1941, %v1958, %v1925
    %v1960 = vsel %vm1942, %v1958, %v1926
    %v1961 = vsel %vm1943, %v1958, %v1927
    %v1962 = vsel %vm1944, %v1958, %v1928
    %v1963 = vsel %vm1945, %v1958, %v1929
    %v1964 = vsel %vm1946, %v1958, %v1930
    %v1965 = vsel %vm1947, %v1958, %v1931
    %v1966 = vsel %vm1948, %v1958, %v1932
    %v1967 = vsel %vm1949, %v1958, %v1933
    %v1968 = vsel %vm1950, %v1958, %v1934
    %v1969 = vsel %vm1951, %v1958, %v1935
    %v1970 = vsel %vm1952, %v1958, %v1936
    %v1971 = vsel %vm1953, %v1958, %v1937
    %v1972 = vsel %vm1954, %v1958, %v1938
    %v1973 = vsel %vm1955, %v1958, %v1939
    %v1974 = vsel %vm1956, %v1958, %v1940
    %vm1975 = vcmp.eq.s32.totalorder %v59, 14
    %vm1976 = vcmp.eq.s32.totalorder %v60, 14
    %vm1977 = vcmp.eq.s32.totalorder %v63, 14
    %vm1978 = vcmp.eq.s32.totalorder %v64, 14
    %vm1979 = vcmp.eq.s32.totalorder %v67, 14
    %vm1980 = vcmp.eq.s32.totalorder %v68, 14
    %vm1981 = vcmp.eq.s32.totalorder %v71, 14
    %vm1982 = vcmp.eq.s32.totalorder %v72, 14
    %vm1983 = vcmp.eq.s32.totalorder %v75, 14
    %vm1984 = vcmp.eq.s32.totalorder %v76, 14
    %vm1985 = vcmp.eq.s32.totalorder %v79, 14
    %vm1986 = vcmp.eq.s32.totalorder %v80, 14
    %vm1987 = vcmp.eq.s32.totalorder %v83, 14
    %vm1988 = vcmp.eq.s32.totalorder %v84, 14
    %vm1989 = vcmp.eq.s32.totalorder %v87, 14
    %vm1990 = vcmp.eq.s32.totalorder %v88, 14
    %s1991 = sld [smem:[#allocation5 + $0xe]]
    %v1992 = vstv %s1991
    %v1993 = vsel %vm1975, %v1992, %v1959
    %v1994 = vsel %vm1976, %v1992, %v1960
    %v1995 = vsel %vm1977, %v1992, %v1961
    %v1996 = vsel %vm1978, %v1992, %v1962
    %v1997 = vsel %vm1979, %v1992, %v1963
    %v1998 = vsel %vm1980, %v1992, %v1964
    %v1999 = vsel %vm1981, %v1992, %v1965
    %v2000 = vsel %vm1982, %v1992, %v1966
    %v2001 = vsel %vm1983, %v1992, %v1967
    %v2002 = vsel %vm1984, %v1992, %v1968
    %v2003 = vsel %vm1985, %v1992, %v1969
    %v2004 = vsel %vm1986, %v1992, %v1970
    %v2005 = vsel %vm1987, %v1992, %v1971
    %v2006 = vsel %vm1988, %v1992, %v1972
    %v2007 = vsel %vm1989, %v1992, %v1973
    %v2008 = vsel %vm1990, %v1992, %v1974
    %vm2009 = vcmp.eq.s32.totalorder %v59, 15
    %vm2010 = vcmp.eq.s32.totalorder %v60, 15
    %vm2011 = vcmp.eq.s32.totalorder %v63, 15
    %vm2012 = vcmp.eq.s32.totalorder %v64, 15
    %vm2013 = vcmp.eq.s32.totalorder %v67, 15
    %vm2014 = vcmp.eq.s32.totalorder %v68, 15
    %vm2015 = vcmp.eq.s32.totalorder %v71, 15
    %vm2016 = vcmp.eq.s32.totalorder %v72, 15
    %vm2017 = vcmp.eq.s32.totalorder %v75, 15
    %vm2018 = vcmp.eq.s32.totalorder %v76, 15
    %vm2019 = vcmp.eq.s32.totalorder %v79, 15
    %vm2020 = vcmp.eq.s32.totalorder %v80, 15
    %vm2021 = vcmp.eq.s32.totalorder %v83, 15
    %vm2022 = vcmp.eq.s32.totalorder %v84, 15
    %vm2023 = vcmp.eq.s32.totalorder %v87, 15
    %vm2024 = vcmp.eq.s32.totalorder %v88, 15
    %s2025 = sld [smem:[#allocation5 + $0xf]]
    %v2026 = vstv %s2025
    %v2027 = vsel %vm2009, %v2026, %v1993
    %v2028 = vsel %vm2010, %v2026, %v1994
    %v2029 = vsel %vm2011, %v2026, %v1995
    %v2030 = vsel %vm2012, %v2026, %v1996
    %v2031 = vsel %vm2013, %v2026, %v1997
    %v2032 = vsel %vm2014, %v2026, %v1998
    %v2033 = vsel %vm2015, %v2026, %v1999
    %v2034 = vsel %vm2016, %v2026, %v2000
    %v2035 = vsel %vm2017, %v2026, %v2001
    %v2036 = vsel %vm2018, %v2026, %v2002
    %v2037 = vsel %vm2019, %v2026, %v2003
    %v2038 = vsel %vm2020, %v2026, %v2004
    %v2039 = vsel %vm2021, %v2026, %v2005
    %v2040 = vsel %vm2022, %v2026, %v2006
    %v2041 = vsel %vm2023, %v2026, %v2007
    %v2042 = vsel %vm2024, %v2026, %v2008
    %v2043 = vadd.f32 %v1619, %v1755
    %v2044 = vadd.f32 %v1620, %v1756
    %v2045 = vadd.f32 %v1621, %v1757
    %v2046 = vadd.f32 %v1622, %v1758
    %v2047 = vadd.f32 %v1623, %v1759
    %v2048 = vadd.f32 %v1624, %v1760
    %v2049 = vadd.f32 %v1625, %v1761
    %v2050 = vadd.f32 %v1626, %v1762
    %v2051 = vadd.f32 %v1627, %v1763
    %v2052 = vadd.f32 %v1628, %v1764
    %v2053 = vadd.f32 %v1629, %v1765
    %v2054 = vadd.f32 %v1630, %v1766
    %v2055 = vadd.f32 %v1631, %v1767
    %v2056 = vadd.f32 %v1632, %v1768
    %v2057 = vadd.f32 %v1633, %v1769
    %v2058 = vadd.f32 %v1634, %v1770
    %v2059 = vadd.f32 %v1891, %v2027
    %v2060 = vadd.f32 %v1892, %v2028
    %v2061 = vadd.f32 %v1893, %v2029
    %v2062 = vadd.f32 %v1894, %v2030
    %v2063 = vadd.f32 %v1895, %v2031
    %v2064 = vadd.f32 %v1896, %v2032
    %v2065 = vadd.f32 %v1897, %v2033
    %v2066 = vadd.f32 %v1898, %v2034
    %v2067 = vadd.f32 %v1899, %v2035
    %v2068 = vadd.f32 %v1900, %v2036
    %v2069 = vadd.f32 %v1901, %v2037
    %v2070 = vadd.f32 %v1902, %v2038
    %v2071 = vadd.f32 %v1903, %v2039
    %v2072 = vadd.f32 %v1904, %v2040
    %v2073 = vadd.f32 %v1905, %v2041
    %v2074 = vadd.f32 %v1906, %v2042
    %v2075 = vadd.f32 %v2043, %v2059
    %v2076 = vadd.f32 %v2044, %v2060
    %v2077 = vadd.f32 %v2045, %v2061
    %v2078 = vadd.f32 %v2046, %v2062
    %v2079 = vadd.f32 %v2047, %v2063
    %v2080 = vadd.f32 %v2048, %v2064
    %v2081 = vadd.f32 %v2049, %v2065
    %v2082 = vadd.f32 %v2050, %v2066
    %v2083 = vadd.f32 %v2051, %v2067
    %v2084 = vadd.f32 %v2052, %v2068
    %v2085 = vadd.f32 %v2053, %v2069
    %v2086 = vadd.f32 %v2054, %v2070
    %v2087 = vadd.f32 %v2055, %v2071
    %v2088 = vadd.f32 %v2056, %v2072
    %v2089 = vadd.f32 %v2057, %v2073
    %v2090 = vadd.f32 %v2058, %v2074
    %v2091 = vmul.f32 %v2075, %v91
    %v2092 = vmul.f32 %v2076, %v92
    %v2093 = vmul.f32 %v2077, %v95
    %v2094 = vmul.f32 %v2078, %v96
    %v2095 = vmul.f32 %v2079, %v99
    %v2096 = vmul.f32 %v2080, %v100
    %v2097 = vmul.f32 %v2081, %v103
    %v2098 = vmul.f32 %v2082, %v104
    %v2099 = vmul.f32 %v2083, %v107
    %v2100 = vmul.f32 %v2084, %v108
    %v2101 = vmul.f32 %v2085, %v111
    %v2102 = vmul.f32 %v2086, %v112
    %v2103 = vmul.f32 %v2087, %v115
    %v2104 = vmul.f32 %v2088, %v116
    %v2105 = vmul.f32 %v2089, %v119
    %v2106 = vmul.f32 %v2090, %v120
    %v2107 = vsel %vm1273, %v2091, -inf
    %v2108 = vrot.slane %v2107, 4
    %v2109 = vmax.f32 %v2107, %v2108
    %v2110 = vrot.slane %v2109, 2
    %v2111 = vmax.f32 %v2109, %v2110
    %v2112 = vrot.slane %v2111, 1
    %v2113 = vmax.f32 %v2111, %v2112
    %v2114 = vsel %vm1273, %v2092, -inf
    %v2115 = vrot.slane %v2114, 4
    %v2116 = vmax.f32 %v2114, %v2115
    %v2117 = vrot.slane %v2116, 2
    %v2118 = vmax.f32 %v2116, %v2117
    %v2119 = vrot.slane %v2118, 1
    %v2120 = vmax.f32 %v2118, %v2119
    %v2121 = vsel %vm1273, %v2093, -inf
    %v2122 = vrot.slane %v2121, 4
    %v2123 = vmax.f32 %v2121, %v2122
    %v2124 = vrot.slane %v2123, 2
    %v2125 = vmax.f32 %v2123, %v2124
    %v2126 = vrot.slane %v2125, 1
    %v2127 = vmax.f32 %v2125, %v2126
    %v2128 = vsel %vm1273, %v2094, -inf
    %v2129 = vrot.slane %v2128, 4
    %v2130 = vmax.f32 %v2128, %v2129
    %v2131 = vrot.slane %v2130, 2
    %v2132 = vmax.f32 %v2130, %v2131
    %v2133 = vrot.slane %v2132, 1
    %v2134 = vmax.f32 %v2132, %v2133
    %v2135 = vsel %vm1273, %v2095, -inf
    %v2136 = vrot.slane %v2135, 4
    %v2137 = vmax.f32 %v2135, %v2136
    %v2138 = vrot.slane %v2137, 2
    %v2139 = vmax.f32 %v2137, %v2138
    %v2140 = vrot.slane %v2139, 1
    %v2141 = vmax.f32 %v2139, %v2140
    %v2142 = vsel %vm1273, %v2096, -inf
    %v2143 = vrot.slane %v2142, 4
    %v2144 = vmax.f32 %v2142, %v2143
    %v2145 = vrot.slane %v2144, 2
    %v2146 = vmax.f32 %v2144, %v2145
    %v2147 = vrot.slane %v2146, 1
    %v2148 = vmax.f32 %v2146, %v2147
    %v2149 = vsel %vm1273, %v2097, -inf
    %v2150 = vrot.slane %v2149, 4
    %v2151 = vmax.f32 %v2149, %v2150
    %v2152 = vrot.slane %v2151, 2
    %v2153 = vmax.f32 %v2151, %v2152
    %v2154 = vrot.slane %v2153, 1
    %v2155 = vmax.f32 %v2153, %v2154
    %v2156 = vsel %vm1273, %v2098, -inf
    %v2157 = vrot.slane %v2156, 4
    %v2158 = vmax.f32 %v2156, %v2157
    %v2159 = vrot.slane %v2158, 2
    %v2160 = vmax.f32 %v2158, %v2159
    %v2161 = vrot.slane %v2160, 1
    %v2162 = vmax.f32 %v2160, %v2161
    %v2163 = vsel %vm1273, %v2099, -inf
    %v2164 = vrot.slane %v2163, 4
    %v2165 = vmax.f32 %v2163, %v2164
    %v2166 = vrot.slane %v2165, 2
    %v2167 = vmax.f32 %v2165, %v2166
    %v2168 = vrot.slane %v2167, 1
    %v2169 = vmax.f32 %v2167, %v2168
    %v2170 = vsel %vm1273, %v2100, -inf
    %v2171 = vrot.slane %v2170, 4
    %v2172 = vmax.f32 %v2170, %v2171
    %v2173 = vrot.slane %v2172, 2
    %v2174 = vmax.f32 %v2172, %v2173
    %v2175 = vrot.slane %v2174, 1
    %v2176 = vmax.f32 %v2174, %v2175
    %v2177 = vsel %vm1273, %v2101, -inf
    %v2178 = vrot.slane %v2177, 4
    %v2179 = vmax.f32 %v2177, %v2178
    %v2180 = vrot.slane %v2179, 2
    %v2181 = vmax.f32 %v2179, %v2180
    %v2182 = vrot.slane %v2181, 1
    %v2183 = vmax.f32 %v2181, %v2182
    %v2184 = vsel %vm1273, %v2102, -inf
    %v2185 = vrot.slane %v2184, 4
    %v2186 = vmax.f32 %v2184, %v2185
    %v2187 = vrot.slane %v2186, 2
    %v2188 = vmax.f32 %v2186, %v2187
    %v2189 = vrot.slane %v2188, 1
    %v2190 = vmax.f32 %v2188, %v2189
    %v2191 = vsel %vm1273, %v2103, -inf
    %v2192 = vrot.slane %v2191, 4
    %v2193 = vmax.f32 %v2191, %v2192
    %v2194 = vrot.slane %v2193, 2
    %v2195 = vmax.f32 %v2193, %v2194
    %v2196 = vrot.slane %v2195, 1
    %v2197 = vmax.f32 %v2195, %v2196
    %v2198 = vsel %vm1273, %v2104, -inf
    %v2199 = vrot.slane %v2198, 4
    %v2200 = vmax.f32 %v2198, %v2199
    %v2201 = vrot.slane %v2200, 2
    %v2202 = vmax.f32 %v2200, %v2201
    %v2203 = vrot.slane %v2202, 1
    %v2204 = vmax.f32 %v2202, %v2203
    %v2205 = vsel %vm1273, %v2105, -inf
    %v2206 = vrot.slane %v2205, 4
    %v2207 = vmax.f32 %v2205, %v2206
    %v2208 = vrot.slane %v2207, 2
    %v2209 = vmax.f32 %v2207, %v2208
    %v2210 = vrot.slane %v2209, 1
    %v2211 = vmax.f32 %v2209, %v2210
    %v2212 = vsel %vm1273, %v2106, -inf
    %v2213 = vrot.slane %v2212, 4
    %v2214 = vmax.f32 %v2212, %v2213
    %v2215 = vrot.slane %v2214, 2
    %v2216 = vmax.f32 %v2214, %v2215
    %v2217 = vrot.slane %v2216, 1
    %v2218 = vmax.f32 %v2216, %v2217
    %s2219 = sld [smem:[#allocation7]]
    %s2220 = sld [smem:[#allocation7 + $0x1]]
    %v2221 = vstv %s2219
    %v2222 = vmul.f32 %v1393, %v2221
    %v2223 = vmul.f32 %v1400, %v2221
    %v2224 = vmul.f32 %v1407, %v2221
    %v2225 = vmul.f32 %v1414, %v2221
    %v2226 = vmul.f32 %v1421, %v2221
    %v2227 = vmul.f32 %v1428, %v2221
    %v2228 = vmul.f32 %v1435, %v2221
    %v2229 = vmul.f32 %v1442, %v2221
    %v2230 = vmul.f32 %v1449, %v2221
    %v2231 = vmul.f32 %v1456, %v2221
    %v2232 = vmul.f32 %v1463, %v2221
    %v2233 = vmul.f32 %v1470, %v2221
    %v2234 = vmul.f32 %v1477, %v2221
    %v2235 = vmul.f32 %v1484, %v2221
    %v2236 = vmul.f32 %v1491, %v2221
    %v2237 = vmul.f32 %v1498, %v2221
    %vm2254 = vcmask 1041409
    %v2255 = vsel %vm2254, %v2224, %v2222
    %vm2256 = vcmask 1042434
    %v2257 = vsel %vm2256, %v2226, %v2255
    %vm2258 = vcmask 1043459
    %v2259 = vsel %vm2258, %v2228, %v2257
    %vm2260 = vcmask 1044484
    %v2261 = vsel %vm2260, %v2230, %v2259
    %vm2262 = vcmask 1045509
    %v2263 = vsel %vm2262, %v2232, %v2261
    %vm2264 = vcmask 1046534
    %v2265 = vsel %vm2264, %v2234, %v2263
    %vm2266 = vcmask 1047559
    %v2267 = vsel %vm2266, %v2236, %v2265
    %v2268 = vsel %vm2254, %v2225, %v2223
    %v2269 = vsel %vm2256, %v2227, %v2268
    %v2270 = vsel %vm2258, %v2229, %v2269
    %v2271 = vsel %vm2260, %v2231, %v2270
    %v2272 = vsel %vm2262, %v2233, %v2271
    %v2273 = vsel %vm2264, %v2235, %v2272
    %v2274 = vsel %vm2266, %v2237, %v2273
    %2277 = vst [vmem:[#allocation8] sm:$0xff] %v2267
    %2278 = vst [vmem:[#allocation8 + $0x8] sm:$0xff] %v2274
    %v2279 = vstv %s2220
    %v2280 = vmul.f32 %v2113, %v2279
    %v2281 = vmul.f32 %v2120, %v2279
    %v2282 = vmul.f32 %v2127, %v2279
    %v2283 = vmul.f32 %v2134, %v2279
    %v2284 = vmul.f32 %v2141, %v2279
    %v2285 = vmul.f32 %v2148, %v2279
    %v2286 = vmul.f32 %v2155, %v2279
    %v2287 = vmul.f32 %v2162, %v2279
    %v2288 = vmul.f32 %v2169, %v2279
    %v2289 = vmul.f32 %v2176, %v2279
    %v2290 = vmul.f32 %v2183, %v2279
    %v2291 = vmul.f32 %v2190, %v2279
    %v2292 = vmul.f32 %v2197, %v2279
    %v2293 = vmul.f32 %v2204, %v2279
    %v2294 = vmul.f32 %v2211, %v2279
    %v2295 = vmul.f32 %v2218, %v2279
    %v2312 = vsel %vm2254, %v2282, %v2280
    %v2313 = vsel %vm2256, %v2284, %v2312
    %v2314 = vsel %vm2258, %v2286, %v2313
    %v2315 = vsel %vm2260, %v2288, %v2314
    %v2316 = vsel %vm2262, %v2290, %v2315
    %v2317 = vsel %vm2264, %v2292, %v2316
    %v2318 = vsel %vm2266, %v2294, %v2317
    %v2319 = vsel %vm2254, %v2283, %v2281
    %v2320 = vsel %vm2256, %v2285, %v2319
    %v2321 = vsel %vm2258, %v2287, %v2320
    %v2322 = vsel %vm2260, %v2289, %v2321
    %v2323 = vsel %vm2262, %v2291, %v2322
    %v2324 = vsel %vm2264, %v2293, %v2323
    %v2325 = vsel %vm2266, %v2295, %v2324
    %s2328 = scalar_lea.vmem [#allocation8], 16
    %2329 = vst [vmem:[%s2328] sm:$0xff] %v2318
    %2330 = vst [vmem:[%s2328 + $0x8] sm:$0xff] %v2325
    %v2331 = vmul.f32 %v1280, %v2221
    %v2332 = vmul.f32 %v1287, %v2221
    %v2333 = vmul.f32 %v1294, %v2221
    %v2334 = vmul.f32 %v1301, %v2221
    %v2335 = vmul.f32 %v1308, %v2221
    %v2336 = vmul.f32 %v1315, %v2221
    %v2337 = vmul.f32 %v1322, %v2221
    %v2338 = vmul.f32 %v1329, %v2221
    %v2339 = vmul.f32 %v1336, %v2221
    %v2340 = vmul.f32 %v1343, %v2221
    %v2341 = vmul.f32 %v1350, %v2221
    %v2342 = vmul.f32 %v1357, %v2221
    %v2343 = vmul.f32 %v1364, %v2221
    %v2344 = vmul.f32 %v1371, %v2221
    %v2345 = vmul.f32 %v1378, %v2221
    %v2346 = vmul.f32 %v1385, %v2221
    %v2363 = vsel %vm2254, %v2333, %v2331
    %v2364 = vsel %vm2256, %v2335, %v2363
    %v2365 = vsel %vm2258, %v2337, %v2364
    %v2366 = vsel %vm2260, %v2339, %v2365
    %v2367 = vsel %vm2262, %v2341, %v2366
    %v2368 = vsel %vm2264, %v2343, %v2367
    %v2369 = vsel %vm2266, %v2345, %v2368
    %v2370 = vsel %vm2254, %v2334, %v2332
    %v2371 = vsel %vm2256, %v2336, %v2370
    %v2372 = vsel %vm2258, %v2338, %v2371
    %v2373 = vsel %vm2260, %v2340, %v2372
    %v2374 = vsel %vm2262, %v2342, %v2373
    %v2375 = vsel %vm2264, %v2344, %v2374
    %v2376 = vsel %vm2266, %v2346, %v2375
    %s2379 = scalar_lea.vmem [#allocation8], 32
    %2380 = vst [vmem:[%s2379] sm:$0xff] %v2369
    %2381 = vst [vmem:[%s2379 + $0x8] sm:$0xff] %v2376
    // Predicated region
    $region34: #{tpu_custom_call.1} parent=1 // pred_check
      _
    $region35: #{tpu_custom_call.1} parent=1 // pred_check_branch
      %2383 = sbr.rel (0) target = $region37
    $region36: #{tpu_custom_call.1} parent=1 // pred_region
      %2385 = vsyncadd [#allocation3], 0
      %s2386 = sshll.u32 [#allocation8], 4
      %s2387 = int_to_ptr.vmem [resolvable:$true] %s2386
      %s2388 = sshll.u32 %s5, 4
      %s2389 = int_to_ptr.hbm [resolvable:$true] %s2388
      %2394 = dma.vmem_to_hbm [thread:$0]  %s2387, 768, %s2389, [#allocation3], 256, 256, 16
    $region37: #{tpu_custom_call.1} parent=1 // pred_fallthru
      _
    // Predicated region
    $region38: #{tpu_custom_call.1} parent=1 // pred_check
      _
    $region39: #{tpu_custom_call.1} parent=1 // pred_check_branch
      %2396 = sbr.rel (0) target = $region41
    $region40: #{tpu_custom_call.1} parent=1 // pred_region
      %2398 = dma.done [#allocation3], 768
    $region41: #{tpu_custom_call.1} parent=1 // pred_fallthru
      _
    %2399 = vsyncpa [#allocation3], 1
    %2400 = vsyncpa [#allocation4], 1
    %2401 = vsyncpa [#allocation6], 1

</llo_original>
